<compile_context>
chip_gen: v7x
topology: tpu7x:2x2x1
jax: 0.10.0
libtpu: 0.0.40
codegen_flags: <defaults>
</compile_context>

<pallas_src>
import functools
import math

import jax
import jax.numpy as jnp
import numpy as np
from jax import lax
from jax.experimental import pallas as pl
from jax.experimental.pallas import tpu as pltpu

# Fixed smoothing taps from the module's __init__ (deterministic, no checkpoint).
# 3x3 kernel: outer columns share vertical taps A, the center column has taps B.
_A1, _A0 = 0.0751, 0.1238          # vertical taps of the outer kernel columns
_B1, _B0 = 0.1238, 0.2042          # vertical taps of the center kernel column


# ------------------------ folded column (lane-axis) constant ------------------
def _reflect(i, n):
    if i < 0:
        return -i
    if i >= n:
        return 2 * n - 2 - i
    return i


def _hshift_sum_matrix(n):
    """(n, n) T so that (x @ T)[:, w] = x[:, refl(w-1)] + x[:, refl(w+1)]."""
    t = np.zeros((n, n), np.float64)
    for w in range(n):
        for off in (-1, 1):
            t[_reflect(w + off, n), w] += 1.0
    return t


def _pool_matrix(n):
    """(n, ceil(n/2)) pooling matrix; folds the ReplicationPad2d for odd n."""
    no = -(-n // 2)
    p = np.zeros((n, no), np.float64)
    for j in range(no):
        if 2 * j + 1 < n:
            p[2 * j, j] = 0.5
            p[2 * j + 1, j] = 0.5
        else:
            p[2 * j, j] = 1.0
    return p


@functools.lru_cache(maxsize=None)
def _col_fold_np(W):
    """(W, 2*Wo) = [T@P | P]: horizontal reflect+shift-sum fused with column pool."""
    t = _hshift_sum_matrix(W)
    p = _pool_matrix(W)
    return np.concatenate([t @ p, p], axis=1)


# --------------------------------- kernel -------------------------------------
def _make_pyramid_kernel(tb, shapes):
    """Fused multi-level downsample kernel. shapes = [(H0,W0), (H1,W1), ...]."""
    n_steps = len(shapes) - 1

    def kernel(*refs):
        x_ref = refs[0]
        c_refs = refs[1:1 + n_steps]
        o_refs = refs[1 + n_steps:1 + 2 * n_steps]
        s_refs = refs[1 + 2 * n_steps:]

        cur = x_ref[...]                                       # (tb, H0, W0)
        for s in range(n_steps):
            H, W = shapes[s]
            Ho, Wo = shapes[s + 1]
            He = H - (H % 2)                                   # even-height prefix
            npairs = He // 2
            nrows = tb * H

            # ---- column stage: horizontal smoothing (+reflection) fused with
            # column pooling as a single flat 2-D MXU matmul; the (W, 2*Wo)
            # constant is never tiled over the batch.
            cdt = c_refs[s].dtype
            x2 = cur.reshape(nrows, W).astype(cdt)
            t2 = jnp.dot(x2, c_refs[s][...],
                         preferred_element_type=jnp.float32)  # (tb*H, 2*Wo) f32
            ua = t2[:, :Wo]                                    # outer-columns stream
            ub = t2[:, Wo:]                                    # center-column stream

            # ---- row stage (banded, VPU/XLU): 3-tap vertical smoothing with
            # reflection via sublane rolls + per-image boundary masks.
            row = lax.broadcasted_iota(
                jnp.int32, (tb, H, Wo), 1).reshape(nrows, Wo)

            def refl_sum(v):
                prev = pltpu.roll(v, shift=1, axis=0)          # v[r-1] (wraps)
                nxt = pltpu.roll(v, shift=nrows - 1, axis=0)   # v[r+1] (wraps)
                up = jnp.where(row == 0, nxt, prev)            # v[reflect(h-1)]
                dn = jnp.where(row == H - 1, prev, nxt)        # v[reflect(h+1)]
                return up + dn

            sm = (_A1 * refl_sum(ua) + _A0 * ua +
                  _B1 * refl_sum(ub) + _B0 * ub)               # (tb*H, Wo) f32
            sm3 = sm.reshape(tb, H, Wo)

            # ---- 2x row pooling: stage the even-height prefix of the smoothed
            # rows in VMEM scratch and read even/odd rows with stride-2 loads.
            s_refs[s][...] = sm3[:, :He, :].reshape(tb * He, Wo)
            even = s_refs[s][pl.ds(0, tb * npairs, 2), :]
            odd = s_refs[s][pl.ds(1, tb * npairs, 2), :]
            pairs = (0.5 * (even + odd)).reshape(tb, npairs, Wo)

            odt = o_refs[s].dtype
            if H % 2 == 0:
                o_refs[s][...] = pairs.astype(odt)
            else:
                # Replication pad + pool of the trailing odd row is the row itself.
                o_refs[s][:, :npairs, :] = pairs.astype(odt)
                o_refs[s][:, npairs:Ho, :] = sm3[:, H - 1:H, :].astype(odt)

            # Next level consumes this level's output in its storage dtype.
            cur = o_refs[s][...]

    return kernel


# --------------------------- VMEM model & tiling ------------------------------
def _vmem_budget():
    cap = 64 << 20                                  # conservative default (v7x/TC)
    try:
        c = int(pltpu.get_tpu_info().vmem_capacity_bytes)
        if c > 0:
            cap = c
    except Exception:
        pass
    # Heuristic: 64 MiB parts (v7x) have 2 TensorCores sharing the batch grid;
    # 128 MiB parts (v5e/v6e) have one, so use bigger tiles / higher limit there.
    two_core = cap < (100 << 20)
    budget = max(24 << 20, min(cap - (8 << 20), 100 << 20))
    return budget, two_core


def _group_vmem(shapes, x_itemsize, c_itemsize):
    """Explicit VMEM model for one fused group: (fixed bytes, bytes/slice)."""
    H0, W0 = shapes[0]
    fixed = 0
    per = 2 * H0 * W0 * x_itemsize                  # double-buffered input block
    per += 6 * H0 * W0 * 4                          # f32 working set, largest step
    for (H, W), (Ho, Wo) in zip(shapes[:-1], shapes[1:]):
        fixed += 2 * W * (2 * Wo) * c_itemsize      # double-buffered column matrix
        per += 2 * Ho * Wo * x_itemsize             # double-buffered output block
        per += (H - H % 2) * Wo * 4                 # f32 row-pooling scratch
    return fixed, per


def _pick_tb(B, cap):
    cap = int(max(1, min(B, cap)))
    div = 1
    for d in range(cap, 0, -1):
        if B % d == 0:
            div = d
            break
    if 2 * div >= cap:
        return div
    # No divisor near the cap: use a non-divisor tile with a ceil grid; the
    # overhanging rows of the last block are dropped by Pallas on store.
    return cap


# --------------------------------- wrapper ------------------------------------
def _run_group(x3, shapes, budget, two_core):
    """x3: (B, H0, W0); fuses len(shapes)-1 downsample levels into one launch."""
    B, H0, W0 = x3.shape
    n_steps = len(shapes) - 1
    cdt = jnp.bfloat16 if x3.dtype == jnp.bfloat16 else jnp.float32
    c_isz = 2 if cdt == jnp.bfloat16 else 4
    consts = [jnp.asarray(_col_fold_np(shapes[s][1]), cdt) for s in range(n_steps)]

    x_isz = x3.dtype.itemsize
    fixed, per = _group_vmem(shapes, x_isz, c_isz)
    target_block = (4 << 20) if two_core else (8 << 20)   # larger tiles on 1-TC parts
    tb_cap = min(B,
                 max(1, target_block // max(1, H0 * W0 * x_isz)),
                 max(1, (budget - fixed) // max(1, per)))
    if two_core and B >= 2:
        tb_cap = min(tb_cap, -(-B // 2))                  # give both TensorCores work
    tb = _pick_tb(B, tb_cap)
    n_blocks = -(-B // tb)
    vmem_limit = int(min(budget, max(32 << 20, fixed + tb * per + (4 << 20))))

    in_specs = [pl.BlockSpec((tb, H0, W0), lambda i: (i, 0, 0))]
    # TODO(synk): pipeline_mode=pl.Buffered(1) on these grid-invariant constants.
    for s in range(n_steps):
        in_specs.append(pl.BlockSpec(consts[s].shape, lambda i: (0, 0)))
    out_specs = [pl.BlockSpec((tb,) + shapes[s + 1], lambda i: (i, 0, 0))
                 for s in range(n_steps)]
    out_shape = tuple(jax.ShapeDtypeStruct((B,) + shapes[s + 1], x3.dtype)
                      for s in range(n_steps))
    scratch_shapes = [
        pltpu.VMEM((tb * (shapes[s][0] - shapes[s][0] % 2), shapes[s + 1][1]),
                   jnp.float32)
        for s in range(n_steps)]

    outs = pl.pallas_call(
        _make_pyramid_kernel(tb, shapes),
        out_shape=out_shape,
        grid=(n_blocks,),
        in_specs=in_specs,
        out_specs=out_specs,
        scratch_shapes=scratch_shapes,
        compiler_params=pltpu.CompilerParams(
            dimension_semantics=("parallel",),
            vmem_limit_bytes=vmem_limit),
    )(x3, *consts)
    if not isinstance(outs, (tuple, list)):
        outs = (outs,)
    return list(outs)


def pallas_image_pyramid(x4, num_levels):
    """x4: (N, C, H, W). Returns the num_levels-1 downsampled levels (4-D each)."""
    N, C, H, W = x4.shape
    shapes = [(H, W)]
    for _ in range(num_levels - 1):
        h, w = shapes[-1]
        if h < 2 or w < 2:
            raise ValueError("ReflectionPad2d(1) needs spatial dims >= 2 per level")
        shapes.append((-(-h // 2), -(-w // 2)))
    if num_levels <= 1:
        return []

    B = N * C
    x3 = x4.reshape(B, H, W)
    budget, two_core = _vmem_budget()
    x_isz = x4.dtype.itemsize
    c_isz = 2 if x4.dtype == jnp.bfloat16 else 4

    levels, cur, s = [], x3, 0
    while s < num_levels - 1:
        # Greedily fuse as many consecutive levels as fit the VMEM budget into a
        # single pallas_call (one launch, intermediates stay on chip).
        n = 1
        while s + n < num_levels - 1:
            fixed, per = _group_vmem(shapes[s:s + n + 2], x_isz, c_isz)
            if fixed + per <= budget:
                n += 1
            else:
                break
        outs = _run_group(cur, shapes[s:s + n + 1], budget, two_core)
        levels.extend(outs)
        cur = outs[-1]
        s += n

    return [lvl.reshape(N, C, lvl.shape[-2], lvl.shape[-1]) for lvl in levels]


def image_pyramid_forward(x, pyramid_layer_num, do_detach=True):
    """Equivalent of ImagePyramidLayer.forward (accepts 2-D/3-D/4-D like PyTorch)."""
    ndim = x.ndim
    if ndim == 2:
        x4 = x[None, None]
    elif ndim == 3:
        x4 = x[:, None]
    else:
        x4 = x

    downs = pallas_image_pyramid(x4, pyramid_layer_num)

    pyramid = [x]
    for i, d4 in enumerate(downs):
        if ndim == 2:
            d = d4[0, 0]
        elif ndim == 3:
            d = d4[:, 0]
        else:
            d = d4
        if do_detach:
            d = jax.lax.stop_gradient(d)
        assert math.ceil(pyramid[i].shape[-1] / 2) == d.shape[-1]
        pyramid.append(d)
    return pyramid


# ---------------- pure-JAX reference (for correctness check only) -------------
def _ref_downsample(x):
    N, C, H, W = x.shape
    xp = jnp.pad(x, ((0, 0), (0, 0), (1, 1), (1, 1)), mode="reflect")
    k = np.zeros((3, 3), np.float32)
    k[:, 0] = k[:, 2] = (_A1, _A0, _A1)
    k[:, 1] = (_B1, _B0, _B1)
    k = jnp.tile(jnp.asarray(k).reshape(1, 1, 3, 3), (C, 1, 1, 1))  # depthwise
    y = jax.lax.conv_general_dilated(
        xp, k, window_strides=(1, 1), padding="VALID",
        feature_group_count=C, dimension_numbers=("NCHW", "OIHW", "NCHW"),
        precision=jax.lax.Precision.HIGHEST)
    y = jnp.pad(y, ((0, 0), (0, 0), (0, H % 2), (0, W % 2)), mode="edge")
    Hp, Wp = y.shape[-2:]
    return y.reshape(N, C, Hp // 2, 2, Wp // 2, 2).mean(axis=(3, 5))


def _ref_pyramid(x, n):
    pyr = [x]
    for _ in range(n - 1):
        pyr.append(_ref_downsample(pyr[-1]))
    return pyr


if __name__ == "__main__":
    flag = 4                       # channels
    pyramid_layer_num = 4
    x = jax.random.normal(jax.random.PRNGKey(0), (2, flag, 16, 16), dtype=jnp.float32)

    pyr = image_pyramid_forward(x, pyramid_layer_num)
    pyr = [jax.block_until_ready(p) for p in pyr]

    ref = _ref_pyramid(x, pyramid_layer_num)
    for a, b in zip(pyr, ref):
        assert a.shape == b.shape and a.dtype == b.dtype
        np.testing.assert_allclose(np.asarray(a), np.asarray(b), atol=3e-5, rtol=3e-5)

    # Odd spatial sizes exercise the ReplicationPad2d path (9 -> 5 -> 3).
    x_odd = jax.random.normal(jax.random.PRNGKey(1), (2, flag, 9, 9), dtype=jnp.float32)
    pyr_odd = image_pyramid_forward(x_odd, 3)
    pyr_odd = [jax.block_until_ready(p) for p in pyr_odd]
    ref_odd = _ref_pyramid(x_odd, 3)
    for a, b in zip(pyr_odd, ref_odd):
        assert a.shape == b.shape
        np.testing.assert_allclose(np.asarray(a), np.asarray(b), atol=3e-5, rtol=3e-5)

    print("KERNEL_OK")
</pallas_src>

<mosaic_0001>
module attributes {stable_mosaic.version = 11 : i64} {
  func.func @kernel(%arg0: i32, %arg1: memref<4x16x16xf32, #tpu.memory_space<vmem>>, %arg2: memref<16x16xf32, #tpu.memory_space<vmem>>, %arg3: memref<8x8xf32, #tpu.memory_space<vmem>>, %arg4: memref<4x4xf32, #tpu.memory_space<vmem>>, %arg5: memref<4x8x8xf32, #tpu.memory_space<vmem>>, %arg6: memref<4x4x4xf32, #tpu.memory_space<vmem>>, %arg7: memref<4x2x2xf32, #tpu.memory_space<vmem>>, %arg8: memref<64x8xf32, #tpu.memory_space<vmem>>, %arg9: memref<32x4xf32, #tpu.memory_space<vmem>>, %arg10: memref<16x2xf32, #tpu.memory_space<vmem>>) attributes {dimension_semantics = [#tpu.dimension_semantics<parallel>], iteration_bounds = array<i64: 2>, scalar_prefetch = 0 : i64, scratch_operands = 3 : i64, tpu.core_type = #tpu.core_type<tc>, window_params = [{transform_indices = @transform_0, window_bounds = array<i64: 4, 16, 16>}, {pipeline_mode = #tpu.pipeline_mode<synchronous>, transform_indices = @transform_1, window_bounds = array<i64: 16, 16>}, {pipeline_mode = #tpu.pipeline_mode<synchronous>, transform_indices = @transform_2, window_bounds = array<i64: 8, 8>}, {pipeline_mode = #tpu.pipeline_mode<synchronous>, transform_indices = @transform_3, window_bounds = array<i64: 4, 4>}, {transform_indices = @transform_4, window_bounds = array<i64: 4, 8, 8>}, {transform_indices = @transform_5, window_bounds = array<i64: 4, 4, 4>}, {transform_indices = @transform_6, window_bounds = array<i64: 4, 2, 2>}]} {
    %c0 = arith.constant 0 : index
    %c0_0 = arith.constant 0 : index
    %c0_1 = arith.constant 0 : index
    %0 = vector.load %arg1[%c0, %c0_0, %c0_1] : memref<4x16x16xf32, #tpu.memory_space<vmem>>, vector<4x16x16xf32>
    %1 = vector.shape_cast %0 : vector<4x16x16xf32> to vector<64x16xf32>
    %c0_2 = arith.constant 0 : index
    %c0_3 = arith.constant 0 : index
    %2 = vector.load %arg2[%c0_2, %c0_3] : memref<16x16xf32, #tpu.memory_space<vmem>>, vector<16x16xf32>
    %cst = arith.constant dense<0.000000e+00> : vector<64x16xf32>
    %3 = tpu.matmul %1, %2, %cst {dimension_numbers = #tpu.dot_dimension_numbers<[1], [0], [0], [1], [0, 0, 1, 1], [], []>} : vector<64x16xf32>, vector<16x16xf32>, vector<64x16xf32> -> vector<64x16xf32>
    %4 = vector.extract_strided_slice %3 {offsets = [0, 0], sizes = [64, 8], strides = [1, 1]} : vector<64x16xf32> to vector<64x8xf32>
    %5 = vector.extract_strided_slice %3 {offsets = [0, 8], sizes = [64, 8], strides = [1, 1]} : vector<64x16xf32> to vector<64x8xf32>
    %6 = tpu.iota {dimensions = array<i32: 1>} : vector<4x16x8xi32>
    %7 = vector.shape_cast %6 : vector<4x16x8xi32> to vector<64x8xi32>
    %c1_i32 = arith.constant 1 : i32
    %8 = tpu.dynamic_rotate %4 by %c1_i32 dim 0 : vector<64x8xf32>, i32 -> vector<64x8xf32>
    %c63_i32 = arith.constant 63 : i32
    %9 = tpu.dynamic_rotate %4 by %c63_i32 dim 0 : vector<64x8xf32>, i32 -> vector<64x8xf32>
    %c0_i32 = arith.constant 0 : i32
    %10 = vector.broadcast %c0_i32 : i32 to vector<64x8xi32>
    %11 = arith.cmpi eq, %7, %10 : vector<64x8xi32>
    %12 = arith.select %11, %9, %8 : vector<64x8xi1>, vector<64x8xf32>
    %c15_i32 = arith.constant 15 : i32
    %13 = vector.broadcast %c15_i32 : i32 to vector<64x8xi32>
    %14 = arith.cmpi eq, %7, %13 : vector<64x8xi32>
    %15 = arith.select %14, %8, %9 : vector<64x8xi1>, vector<64x8xf32>
    %16 = arith.addf %12, %15 : vector<64x8xf32>
    %cst_4 = arith.constant 7.510000e-02 : f32
    %17 = vector.broadcast %cst_4 : f32 to vector<64x8xf32>
    %18 = arith.mulf %17, %16 : vector<64x8xf32>
    %cst_5 = arith.constant 1.238000e-01 : f32
    %19 = vector.broadcast %cst_5 : f32 to vector<64x8xf32>
    %20 = arith.mulf %19, %4 : vector<64x8xf32>
    %21 = arith.addf %18, %20 : vector<64x8xf32>
    %c1_i32_6 = arith.constant 1 : i32
    %22 = tpu.dynamic_rotate %5 by %c1_i32_6 dim 0 : vector<64x8xf32>, i32 -> vector<64x8xf32>
    %c63_i32_7 = arith.constant 63 : i32
    %23 = tpu.dynamic_rotate %5 by %c63_i32_7 dim 0 : vector<64x8xf32>, i32 -> vector<64x8xf32>
    %c0_i32_8 = arith.constant 0 : i32
    %24 = vector.broadcast %c0_i32_8 : i32 to vector<64x8xi32>
    %25 = arith.cmpi eq, %7, %24 : vector<64x8xi32>
    %26 = arith.select %25, %23, %22 : vector<64x8xi1>, vector<64x8xf32>
    %c15_i32_9 = arith.constant 15 : i32
    %27 = vector.broadcast %c15_i32_9 : i32 to vector<64x8xi32>
    %28 = arith.cmpi eq, %7, %27 : vector<64x8xi32>
    %29 = arith.select %28, %22, %23 : vector<64x8xi1>, vector<64x8xf32>
    %30 = arith.addf %26, %29 : vector<64x8xf32>
    %cst_10 = arith.constant 1.238000e-01 : f32
    %31 = vector.broadcast %cst_10 : f32 to vector<64x8xf32>
    %32 = arith.mulf %31, %30 : vector<64x8xf32>
    %33 = arith.addf %21, %32 : vector<64x8xf32>
    %cst_11 = arith.constant 2.042000e-01 : f32
    %34 = vector.broadcast %cst_11 : f32 to vector<64x8xf32>
    %35 = arith.mulf %34, %5 : vector<64x8xf32>
    %36 = arith.addf %33, %35 : vector<64x8xf32>
    %37 = vector.shape_cast %36 : vector<64x8xf32> to vector<4x16x8xf32>
    %38 = vector.shape_cast %37 : vector<4x16x8xf32> to vector<64x8xf32>
    %c0_12 = arith.constant 0 : index
    %c0_13 = arith.constant 0 : index
    %39 = vector.load %arg8[%c0_12, %c0_13] : memref<64x8xf32, #tpu.memory_space<vmem>>, vector<64x8xf32>
    tpu.vector_store %arg8[%c0_12, %c0_13], %38 {strides = array<i32>} : memref<64x8xf32, #tpu.memory_space<vmem>>, vector<64x8xf32>,
    %c0_14 = arith.constant 0 : index
    %c0_15 = arith.constant 0 : index
    %40 = tpu.strided_load %arg8[%c0_14, %c0_15] {strides = array<i32: 2, 1>} : memref<64x8xf32, #tpu.memory_space<vmem>>, vector<32x8xf32>
    %c1 = arith.constant 1 : index
    %c0_16 = arith.constant 0 : index
    %41 = tpu.strided_load %arg8[%c1, %c0_16] {strides = array<i32: 2, 1>} : memref<64x8xf32, #tpu.memory_space<vmem>>, vector<32x8xf32>
    %42 = arith.addf %40, %41 : vector<32x8xf32>
    %cst_17 = arith.constant 5.000000e-01 : f32
    %43 = vector.broadcast %cst_17 : f32 to vector<32x8xf32>
    %44 = arith.mulf %43, %42 : vector<32x8xf32>
    %45 = vector.shape_cast %44 : vector<32x8xf32> to vector<4x8x8xf32>
    %c0_18 = arith.constant 0 : index
    %c0_19 = arith.constant 0 : index
    %c0_20 = arith.constant 0 : index
    %46 = vector.load %arg5[%c0_18, %c0_19, %c0_20] : memref<4x8x8xf32, #tpu.memory_space<vmem>>, vector<4x8x8xf32>
    tpu.vector_store %arg5[%c0_18, %c0_19, %c0_20], %45 {strides = array<i32>} : memref<4x8x8xf32, #tpu.memory_space<vmem>>, vector<4x8x8xf32>,
    %c0_21 = arith.constant 0 : index
    %c0_22 = arith.constant 0 : index
    %c0_23 = arith.constant 0 : index
    %47 = vector.load %arg5[%c0_21, %c0_22, %c0_23] : memref<4x8x8xf32, #tpu.memory_space<vmem>>, vector<4x8x8xf32>
    %48 = vector.shape_cast %47 : vector<4x8x8xf32> to vector<32x8xf32>
    %c0_24 = arith.constant 0 : index
    %c0_25 = arith.constant 0 : index
    %49 = vector.load %arg3[%c0_24, %c0_25] : memref<8x8xf32, #tpu.memory_space<vmem>>, vector<8x8xf32>
    %cst_26 = arith.constant dense<0.000000e+00> : vector<32x8xf32>
    %50 = tpu.matmul %48, %49, %cst_26 {dimension_numbers = #tpu.dot_dimension_numbers<[1], [0], [0], [1], [0, 0, 1, 1], [], []>} : vector<32x8xf32>, vector<8x8xf32>, vector<32x8xf32> -> vector<32x8xf32>
    %51 = vector.extract_strided_slice %50 {offsets = [0, 0], sizes = [32, 4], strides = [1, 1]} : vector<32x8xf32> to vector<32x4xf32>
    %52 = vector.extract_strided_slice %50 {offsets = [0, 4], sizes = [32, 4], strides = [1, 1]} : vector<32x8xf32> to vector<32x4xf32>
    %53 = tpu.iota {dimensions = array<i32: 1>} : vector<4x8x4xi32>
    %54 = vector.shape_cast %53 : vector<4x8x4xi32> to vector<32x4xi32>
    %c1_i32_27 = arith.constant 1 : i32
    %55 = tpu.dynamic_rotate %51 by %c1_i32_27 dim 0 : vector<32x4xf32>, i32 -> vector<32x4xf32>
    %c31_i32 = arith.constant 31 : i32
    %56 = tpu.dynamic_rotate %51 by %c31_i32 dim 0 : vector<32x4xf32>, i32 -> vector<32x4xf32>
    %c0_i32_28 = arith.constant 0 : i32
    %57 = vector.broadcast %c0_i32_28 : i32 to vector<32x4xi32>
    %58 = arith.cmpi eq, %54, %57 : vector<32x4xi32>
    %59 = arith.select %58, %56, %55 : vector<32x4xi1>, vector<32x4xf32>
    %c7_i32 = arith.constant 7 : i32
    %60 = vector.broadcast %c7_i32 : i32 to vector<32x4xi32>
    %61 = arith.cmpi eq, %54, %60 : vector<32x4xi32>
    %62 = arith.select %61, %55, %56 : vector<32x4xi1>, vector<32x4xf32>
    %63 = arith.addf %59, %62 : vector<32x4xf32>
    %cst_29 = arith.constant 7.510000e-02 : f32
    %64 = vector.broadcast %cst_29 : f32 to vector<32x4xf32>
    %65 = arith.mulf %64, %63 : vector<32x4xf32>
    %cst_30 = arith.constant 1.238000e-01 : f32
    %66 = vector.broadcast %cst_30 : f32 to vector<32x4xf32>
    %67 = arith.mulf %66, %51 : vector<32x4xf32>
    %68 = arith.addf %65, %67 : vector<32x4xf32>
    %c1_i32_31 = arith.constant 1 : i32
    %69 = tpu.dynamic_rotate %52 by %c1_i32_31 dim 0 : vector<32x4xf32>, i32 -> vector<32x4xf32>
    %c31_i32_32 = arith.constant 31 : i32
    %70 = tpu.dynamic_rotate %52 by %c31_i32_32 dim 0 : vector<32x4xf32>, i32 -> vector<32x4xf32>
    %c0_i32_33 = arith.constant 0 : i32
    %71 = vector.broadcast %c0_i32_33 : i32 to vector<32x4xi32>
    %72 = arith.cmpi eq, %54, %71 : vector<32x4xi32>
    %73 = arith.select %72, %70, %69 : vector<32x4xi1>, vector<32x4xf32>
    %c7_i32_34 = arith.constant 7 : i32
    %74 = vector.broadcast %c7_i32_34 : i32 to vector<32x4xi32>
    %75 = arith.cmpi eq, %54, %74 : vector<32x4xi32>
    %76 = arith.select %75, %69, %70 : vector<32x4xi1>, vector<32x4xf32>
    %77 = arith.addf %73, %76 : vector<32x4xf32>
    %cst_35 = arith.constant 1.238000e-01 : f32
    %78 = vector.broadcast %cst_35 : f32 to vector<32x4xf32>
    %79 = arith.mulf %78, %77 : vector<32x4xf32>
    %80 = arith.addf %68, %79 : vector<32x4xf32>
    %cst_36 = arith.constant 2.042000e-01 : f32
    %81 = vector.broadcast %cst_36 : f32 to vector<32x4xf32>
    %82 = arith.mulf %81, %52 : vector<32x4xf32>
    %83 = arith.addf %80, %82 : vector<32x4xf32>
    %84 = vector.shape_cast %83 : vector<32x4xf32> to vector<4x8x4xf32>
    %85 = vector.shape_cast %84 : vector<4x8x4xf32> to vector<32x4xf32>
    %c0_37 = arith.constant 0 : index
    %c0_38 = arith.constant 0 : index
    %86 = vector.load %arg9[%c0_37, %c0_38] : memref<32x4xf32, #tpu.memory_space<vmem>>, vector<32x4xf32>
    tpu.vector_store %arg9[%c0_37, %c0_38], %85 {strides = array<i32>} : memref<32x4xf32, #tpu.memory_space<vmem>>, vector<32x4xf32>,
    %c0_39 = arith.constant 0 : index
    %c0_40 = arith.constant 0 : index
    %87 = tpu.strided_load %arg9[%c0_39, %c0_40] {strides = array<i32: 2, 1>} : memref<32x4xf32, #tpu.memory_space<vmem>>, vector<16x4xf32>
    %c1_41 = arith.constant 1 : index
    %c0_42 = arith.constant 0 : index
    %88 = tpu.strided_load %arg9[%c1_41, %c0_42] {strides = array<i32: 2, 1>} : memref<32x4xf32, #tpu.memory_space<vmem>>, vector<16x4xf32>
    %89 = arith.addf %87, %88 : vector<16x4xf32>
    %cst_43 = arith.constant 5.000000e-01 : f32
    %90 = vector.broadcast %cst_43 : f32 to vector<16x4xf32>
    %91 = arith.mulf %90, %89 : vector<16x4xf32>
    %92 = vector.shape_cast %91 : vector<16x4xf32> to vector<4x4x4xf32>
    %c0_44 = arith.constant 0 : index
    %c0_45 = arith.constant 0 : index
    %c0_46 = arith.constant 0 : index
    %93 = vector.load %arg6[%c0_44, %c0_45, %c0_46] : memref<4x4x4xf32, #tpu.memory_space<vmem>>, vector<4x4x4xf32>
    tpu.vector_store %arg6[%c0_44, %c0_45, %c0_46], %92 {strides = array<i32>} : memref<4x4x4xf32, #tpu.memory_space<vmem>>, vector<4x4x4xf32>,
    %c0_47 = arith.constant 0 : index
    %c0_48 = arith.constant 0 : index
    %c0_49 = arith.constant 0 : index
    %94 = vector.load %arg6[%c0_47, %c0_48, %c0_49] : memref<4x4x4xf32, #tpu.memory_space<vmem>>, vector<4x4x4xf32>
    %95 = vector.shape_cast %94 : vector<4x4x4xf32> to vector<16x4xf32>
    %c0_50 = arith.constant 0 : index
    %c0_51 = arith.constant 0 : index
    %96 = vector.load %arg4[%c0_50, %c0_51] : memref<4x4xf32, #tpu.memory_space<vmem>>, vector<4x4xf32>
    %cst_52 = arith.constant dense<0.000000e+00> : vector<16x4xf32>
    %97 = tpu.matmul %95, %96, %cst_52 {dimension_numbers = #tpu.dot_dimension_numbers<[1], [0], [0], [1], [0, 0, 1, 1], [], []>} : vector<16x4xf32>, vector<4x4xf32>, vector<16x4xf32> -> vector<16x4xf32>
    %98 = vector.extract_strided_slice %97 {offsets = [0, 0], sizes = [16, 2], strides = [1, 1]} : vector<16x4xf32> to vector<16x2xf32>
    %99 = vector.extract_strided_slice %97 {offsets = [0, 2], sizes = [16, 2], strides = [1, 1]} : vector<16x4xf32> to vector<16x2xf32>
    %100 = tpu.iota {dimensions = array<i32: 1>} : vector<4x4x2xi32>
    %101 = vector.shape_cast %100 : vector<4x4x2xi32> to vector<16x2xi32>
    %c1_i32_53 = arith.constant 1 : i32
    %102 = tpu.dynamic_rotate %98 by %c1_i32_53 dim 0 : vector<16x2xf32>, i32 -> vector<16x2xf32>
    %c15_i32_54 = arith.constant 15 : i32
    %103 = tpu.dynamic_rotate %98 by %c15_i32_54 dim 0 : vector<16x2xf32>, i32 -> vector<16x2xf32>
    %c0_i32_55 = arith.constant 0 : i32
    %104 = vector.broadcast %c0_i32_55 : i32 to vector<16x2xi32>
    %105 = arith.cmpi eq, %101, %104 : vector<16x2xi32>
    %106 = arith.select %105, %103, %102 : vector<16x2xi1>, vector<16x2xf32>
    %c3_i32 = arith.constant 3 : i32
    %107 = vector.broadcast %c3_i32 : i32 to vector<16x2xi32>
    %108 = arith.cmpi eq, %101, %107 : vector<16x2xi32>
    %109 = arith.select %108, %102, %103 : vector<16x2xi1>, vector<16x2xf32>
    %110 = arith.addf %106, %109 : vector<16x2xf32>
    %cst_56 = arith.constant 7.510000e-02 : f32
    %111 = vector.broadcast %cst_56 : f32 to vector<16x2xf32>
    %112 = arith.mulf %111, %110 : vector<16x2xf32>
    %cst_57 = arith.constant 1.238000e-01 : f32
    %113 = vector.broadcast %cst_57 : f32 to vector<16x2xf32>
    %114 = arith.mulf %113, %98 : vector<16x2xf32>
    %115 = arith.addf %112, %114 : vector<16x2xf32>
    %c1_i32_58 = arith.constant 1 : i32
    %116 = tpu.dynamic_rotate %99 by %c1_i32_58 dim 0 : vector<16x2xf32>, i32 -> vector<16x2xf32>
    %c15_i32_59 = arith.constant 15 : i32
    %117 = tpu.dynamic_rotate %99 by %c15_i32_59 dim 0 : vector<16x2xf32>, i32 -> vector<16x2xf32>
    %c0_i32_60 = arith.constant 0 : i32
    %118 = vector.broadcast %c0_i32_60 : i32 to vector<16x2xi32>
    %119 = arith.cmpi eq, %101, %118 : vector<16x2xi32>
    %120 = arith.select %119, %117, %116 : vector<16x2xi1>, vector<16x2xf32>
    %c3_i32_61 = arith.constant 3 : i32
    %121 = vector.broadcast %c3_i32_61 : i32 to vector<16x2xi32>
    %122 = arith.cmpi eq, %101, %121 : vector<16x2xi32>
    %123 = arith.select %122, %116, %117 : vector<16x2xi1>, vector<16x2xf32>
    %124 = arith.addf %120, %123 : vector<16x2xf32>
    %cst_62 = arith.constant 1.238000e-01 : f32
    %125 = vector.broadcast %cst_62 : f32 to vector<16x2xf32>
    %126 = arith.mulf %125, %124 : vector<16x2xf32>
    %127 = arith.addf %115, %126 : vector<16x2xf32>
    %cst_63 = arith.constant 2.042000e-01 : f32
    %128 = vector.broadcast %cst_63 : f32 to vector<16x2xf32>
    %129 = arith.mulf %128, %99 : vector<16x2xf32>
    %130 = arith.addf %127, %129 : vector<16x2xf32>
    %131 = vector.shape_cast %130 : vector<16x2xf32> to vector<4x4x2xf32>
    %132 = vector.shape_cast %131 : vector<4x4x2xf32> to vector<16x2xf32>
    %c0_64 = arith.constant 0 : index
    %c0_65 = arith.constant 0 : index
    %133 = vector.load %arg10[%c0_64, %c0_65] : memref<16x2xf32, #tpu.memory_space<vmem>>, vector<16x2xf32>
    tpu.vector_store %arg10[%c0_64, %c0_65], %132 {strides = array<i32>} : memref<16x2xf32, #tpu.memory_space<vmem>>, vector<16x2xf32>,
    %c0_66 = arith.constant 0 : index
    %c0_67 = arith.constant 0 : index
    %134 = tpu.strided_load %arg10[%c0_66, %c0_67] {strides = array<i32: 2, 1>} : memref<16x2xf32, #tpu.memory_space<vmem>>, vector<8x2xf32>
    %c1_68 = arith.constant 1 : index
    %c0_69 = arith.constant 0 : index
    %135 = tpu.strided_load %arg10[%c1_68, %c0_69] {strides = array<i32: 2, 1>} : memref<16x2xf32, #tpu.memory_space<vmem>>, vector<8x2xf32>
    %136 = arith.addf %134, %135 : vector<8x2xf32>
    %cst_70 = arith.constant 5.000000e-01 : f32
    %137 = vector.broadcast %cst_70 : f32 to vector<8x2xf32>
    %138 = arith.mulf %137, %136 : vector<8x2xf32>
    %139 = vector.shape_cast %138 : vector<8x2xf32> to vector<4x2x2xf32>
    %c0_71 = arith.constant 0 : index
    %c0_72 = arith.constant 0 : index
    %c0_73 = arith.constant 0 : index
    %140 = vector.load %arg7[%c0_71, %c0_72, %c0_73] : memref<4x2x2xf32, #tpu.memory_space<vmem>>, vector<4x2x2xf32>
    tpu.vector_store %arg7[%c0_71, %c0_72, %c0_73], %139 {strides = array<i32>} : memref<4x2x2xf32, #tpu.memory_space<vmem>>, vector<4x2x2xf32>,
    return
  }
  func.func @transform_0(%arg0: i32) -> (i32, i32, i32) {
    %c0_i32 = arith.constant 0 : i32
    %c0_i32_0 = arith.constant 0 : i32
    %c0_i32_1 = arith.constant 0 : i32
    return %arg0, %c0_i32, %c0_i32_0 : i32, i32, i32
  }
  func.func @transform_1(%arg0: i32) -> (i32, i32) {
    %c0_i32 = arith.constant 0 : i32
    %c0_i32_0 = arith.constant 0 : i32
    %c0_i32_1 = arith.constant 0 : i32
    return %c0_i32, %c0_i32_0 : i32, i32
  }
  func.func @transform_2(%arg0: i32) -> (i32, i32) {
    %c0_i32 = arith.constant 0 : i32
    %c0_i32_0 = arith.constant 0 : i32
    %c0_i32_1 = arith.constant 0 : i32
    return %c0_i32, %c0_i32_0 : i32, i32
  }
  func.func @transform_3(%arg0: i32) -> (i32, i32) {
    %c0_i32 = arith.constant 0 : i32
    %c0_i32_0 = arith.constant 0 : i32
    %c0_i32_1 = arith.constant 0 : i32
    return %c0_i32, %c0_i32_0 : i32, i32
  }
  func.func @transform_4(%arg0: i32) -> (i32, i32, i32) {
    %c0_i32 = arith.constant 0 : i32
    %c0_i32_0 = arith.constant 0 : i32
    %c0_i32_1 = arith.constant 0 : i32
    return %arg0, %c0_i32, %c0_i32_0 : i32, i32, i32
  }
  func.func @transform_5(%arg0: i32) -> (i32, i32, i32) {
    %c0_i32 = arith.constant 0 : i32
    %c0_i32_0 = arith.constant 0 : i32
    %c0_i32_1 = arith.constant 0 : i32
    return %arg0, %c0_i32, %c0_i32_0 : i32, i32, i32
  }
  func.func @transform_6(%arg0: i32) -> (i32, i32, i32) {
    %c0_i32 = arith.constant 0 : i32
    %c0_i32_0 = arith.constant 0 : i32
    %c0_i32_1 = arith.constant 0 : i32
    return %arg0, %c0_i32, %c0_i32_0 : i32, i32, i32
  }
}

</mosaic_0001>

<llo_original>
// kernel: tpu_custom_call.1
$region0: #{tpu_custom_call.1}
  #allocation0 [shape = 'u32[]', space=smem, size = 0x4, offset = 0x4, fixed_abs, tag = 'smem constant byte address 0x4 - core index']
  #allocation1 [shape = 'u32[144,128]{1,0:T(1,128)}', space=vmem, size = 0x12000, scoped, tag = 'internal scratch']
  #allocation2 [shape = 'f32[64,8]{1,0:T(8,128)}', space=vmem, size = 0x8000, scoped, tag = 'scratch operand']
  #allocation3 [shape = 'f32[32,4]{1,0:T(8,128)}', space=vmem, size = 0x4000, scoped, tag = 'scratch operand']
  #allocation4 [shape = 'f32[16,2]{1,0:T(8,128)}', space=vmem, size = 0x2000, scoped, tag = 'scratch operand']
  %s0 = inlined_call_operand.hbm [shape: f32[8,16,16], index: 0, kind: input, shape index: {}]
  %s1 = inlined_call_operand.hbm [shape: f32[16,16], index: 1, kind: input, shape index: {}]
  %s2 = inlined_call_operand.hbm [shape: f32[8,8], index: 2, kind: input, shape index: {}]
  %s3 = inlined_call_operand.vmem [shape: f32[4,4], index: 3, kind: input, shape index: {}]
  %s4 = inlined_call_operand.hbm [shape: f32[8,8,8], index: 4, kind: output, shape index: {0}]
  %s5 = inlined_call_operand.vmem [shape: f32[8,4,4], index: 5, kind: output, shape index: {1}]
  %s6 = inlined_call_operand.vmem [shape: f32[8,2,2], index: 6, kind: output, shape index: {2}]
  %7 = xla_tuple %s4, %s5, %s6
  %s8 = sld [smem:[#allocation0]]
  $region77: #{tpu_custom_call.1} parent=0
    _
  %s10 = ssub.s32 1, %s8
  %s11 = scalar_select 0, %s10, %s8
  $region1: #{tpu_custom_call.1} parent=0
    #allocation5 [shape = 'u8[65536]{0}', space=vmem, size = 0x10000, scoped, tag = 'input window, operand 0']
    #allocation6 [shape = 's32[2]{0}', space=sflag, size = 0x8, scoped, tag = 'scoped memory for tpu_custom_call.1']
    #allocation7 [shape = 's32[2]{0}', space=sflag, size = 0x8, scoped, tag = 'scoped memory for tpu_custom_call.1']
    #allocation8 [shape = 'u8[8192]{0}', space=vmem, size = 0x2000, scoped, tag = 'input window, operand 1, single buffered']
    #allocation9 [shape = 's32[1]{0}', space=sflag, size = 0x4, scoped, tag = 'scoped memory for tpu_custom_call.1']
    #allocation10 [shape = 'u8[4096]{0}', space=vmem, size = 0x1000, scoped, tag = 'input window, operand 2, single buffered']
    #allocation11 [shape = 'u8[32768]{0}', space=vmem, size = 0x8000, scoped, tag = 'output window, operand 0']
    %12 = vsyncpa [#allocation6], 0
    %s13 = scalar_lea.sflag [#allocation6], 1
    %14 = vsyncpa %s13, 0
    %15 = vsyncpa [#allocation9], 0
    %16 = vsyncpa [#allocation7], 0
    %s17 = scalar_lea.sflag [#allocation7], 1
    %18 = vsyncpa %s17, 0
    loop: start=0, step=1, limit=4
    $region2: #{tpu_custom_call.1} parent=1 // loop_pre_header
      _
    $region3: #{tpu_custom_call.1} parent=1 // loop_header
      %s20 = sphi 0, %s24
      %p21 = scmp.ge.s32.totalorder %s20, 4
      %s30 = sphi 0, %s32
      %s33 = sphi 0, %s30
      %s34 = sphi 0, %s33
      %s50 = sphi 0, %s34
      %s54 = sphi 0, %s54
      %s56 = sphi 0, %s54
      %s57 = sphi 0, %s56
      %s71 = sphi 0, %s57
      %s75 = sphi 0, %s75
      %s77 = sphi 0, %s75
      %s78 = sphi 0, %s77
      %s92 = sphi 0, %s78
      %s96 = sphi 0, %s96
      %s98 = sphi 0, %s96
      %s99 = sphi 0, %s98
      %s113 = sphi 0, %s99
      %s119 = sphi 0, %s121
      %s122 = sphi 0, %s119
      %s123 = sphi 0, %s122
      %s139 = sphi 0, %s123
      %s145 = sphi 0, %s147
      %s148 = sphi 0, %s145
      %s149 = sphi 0, %s148
      %s165 = sphi 0, %s149
      %s171 = sphi 0, %s173
      %s174 = sphi 0, %s171
      %s175 = sphi 0, %s174
      %s191 = sphi 0, %s175
    $region4: #{tpu_custom_call.1} parent=1 // loop_header_branch
      %23 = sbr.rel (%p21) target = $region8
    $region5: #{tpu_custom_call.1} parent=1 // loop_body
      %s25 = ssub.s32 %s20, 1
      %s26 = ssub.s32 %s20, 2
      %s27 = sadd.s32 %s20, 1
      %s28 = ssub.s32 %s20, %s27
      %p29 = scmp.eq.s32.totalorder %s28, 0
      %s31 = sadd.s32 %s30, 1
      %s32 = scalar_select %p29, %s30, %s31
      %p35 = pneg %p29
      %p36 = scmp.eq.s32.totalorder %s20, 1
      %p37 = por %p35, %p36
      %p38 = scmp.ne.s32.totalorder %s30, %s33
      %p39 = scmp.eq.s32.totalorder %s20, 0
      %p40 = por %p38, %p39
      %p41 = scmp.ne.s32.totalorder %s30, %s33
      %p42 = scmp.eq.s32.totalorder %s25, 1
      %p43 = por %p41, %p42
      %p44 = scmp.ne.s32.totalorder %s33, %s34
      %p45 = scmp.eq.s32.totalorder %s25, 0
      %p46 = por %p44, %p45
      %p47 = scmp.ne.s32.totalorder %s33, %s34
      %p48 = scmp.eq.s32.totalorder %s26, 1
      %p49 = por %p47, %p48
      %p51 = scmp.ne.s32.totalorder %s34, %s50
      %p52 = scmp.eq.s32.totalorder %s26, 0
      %p53 = por %p51, %p52
      %s55 = sadd.s32 %s54, 1
      %p58 = scmp.eq.s32.totalorder %s20, 1
      %p59 = scmp.ne.s32.totalorder %s54, %s56
      %p60 = scmp.eq.s32.totalorder %s20, 0
      %p61 = por %p59, %p60
      %p62 = scmp.ne.s32.totalorder %s54, %s56
      %p63 = scmp.eq.s32.totalorder %s25, 1
      %p64 = por %p62, %p63
      %p65 = scmp.ne.s32.totalorder %s56, %s57
      %p66 = scmp.eq.s32.totalorder %s25, 0
      %p67 = por %p65, %p66
      %p68 = scmp.ne.s32.totalorder %s56, %s57
      %p69 = scmp.eq.s32.totalorder %s26, 1
      %p70 = por %p68, %p69
      %p72 = scmp.ne.s32.totalorder %s57, %s71
      %p73 = scmp.eq.s32.totalorder %s26, 0
      %p74 = por %p72, %p73
      %s76 = sadd.s32 %s75, 1
      %p79 = scmp.eq.s32.totalorder %s20, 1
      %p80 = scmp.ne.s32.totalorder %s75, %s77
      %p81 = scmp.eq.s32.totalorder %s20, 0
      %p82 = por %p80, %p81
      %p83 = scmp.ne.s32.totalorder %s75, %s77
      %p84 = scmp.eq.s32.totalorder %s25, 1
      %p85 = por %p83, %p84
      %p86 = scmp.ne.s32.totalorder %s77, %s78
      %p87 = scmp.eq.s32.totalorder %s25, 0
      %p88 = por %p86, %p87
      %p89 = scmp.ne.s32.totalorder %s77, %s78
      %p90 = scmp.eq.s32.totalorder %s26, 1
      %p91 = por %p89, %p90
      %p93 = scmp.ne.s32.totalorder %s78, %s92
      %p94 = scmp.eq.s32.totalorder %s26, 0
      %p95 = por %p93, %p94
      %s97 = sadd.s32 %s96, 1
      %p100 = scmp.eq.s32.totalorder %s20, 1
      %p101 = scmp.ne.s32.totalorder %s96, %s98
      %p102 = scmp.eq.s32.totalorder %s20, 0
      %p103 = por %p101, %p102
      %p104 = scmp.ne.s32.totalorder %s96, %s98
      %p105 = scmp.eq.s32.totalorder %s25, 1
      %p106 = por %p104, %p105
      %p107 = scmp.ne.s32.totalorder %s98, %s99
      %p108 = scmp.eq.s32.totalorder %s25, 0
      %p109 = por %p107, %p108
      %p110 = scmp.ne.s32.totalorder %s98, %s99
      %p111 = scmp.eq.s32.totalorder %s26, 1
      %p112 = por %p110, %p111
      %p114 = scmp.ne.s32.totalorder %s99, %s113
      %p115 = scmp.eq.s32.totalorder %s26, 0
      %p116 = por %p114, %p115
      %s117 = ssub.s32 %s20, %s27
      %p118 = scmp.eq.s32.totalorder %s117, 0
      %s120 = sadd.s32 %s119, 1
      %s121 = scalar_select %p118, %s119, %s120
      %p124 = pneg %p118
      %p125 = scmp.eq.s32.totalorder %s20, 1
      %p126 = por %p124, %p125
      %p127 = scmp.ne.s32.totalorder %s119, %s122
      %p128 = scmp.eq.s32.totalorder %s20, 0
      %p129 = por %p127, %p128
      %p130 = scmp.ne.s32.totalorder %s119, %s122
      %p131 = scmp.eq.s32.totalorder %s25, 1
      %p132 = por %p130, %p131
      %p133 = scmp.ne.s32.totalorder %s122, %s123
      %p134 = scmp.eq.s32.totalorder %s25, 0
      %p135 = por %p133, %p134
      %p136 = scmp.ne.s32.totalorder %s122, %s123
      %p137 = scmp.eq.s32.totalorder %s26, 1
      %p138 = por %p136, %p137
      %p140 = scmp.ne.s32.totalorder %s123, %s139
      %p141 = scmp.eq.s32.totalorder %s26, 0
      %p142 = por %p140, %p141
      %s143 = ssub.s32 %s20, %s27
      %p144 = scmp.eq.s32.totalorder %s143, 0
      %s146 = sadd.s32 %s145, 1
      %s147 = scalar_select %p144, %s145, %s146
      %p150 = pneg %p144
      %p151 = scmp.eq.s32.totalorder %s20, 1
      %p152 = por %p150, %p151
      %p153 = scmp.ne.s32.totalorder %s145, %s148
      %p154 = scmp.eq.s32.totalorder %s20, 0
      %p155 = por %p153, %p154
      %p156 = scmp.ne.s32.totalorder %s145, %s148
      %p157 = scmp.eq.s32.totalorder %s25, 1
      %p158 = por %p156, %p157
      %p159 = scmp.ne.s32.totalorder %s148, %s149
      %p160 = scmp.eq.s32.totalorder %s25, 0
      %p161 = por %p159, %p160
      %p162 = scmp.ne.s32.totalorder %s148, %s149
      %p163 = scmp.eq.s32.totalorder %s26, 1
      %p164 = por %p162, %p163
      %p166 = scmp.ne.s32.totalorder %s149, %s165
      %p167 = scmp.eq.s32.totalorder %s26, 0
      %p168 = por %p166, %p167
      %s169 = ssub.s32 %s20, %s27
      %p170 = scmp.eq.s32.totalorder %s169, 0
      %s172 = sadd.s32 %s171, 1
      %s173 = scalar_select %p170, %s171, %s172
      %p176 = pneg %p170
      %p177 = scmp.eq.s32.totalorder %s20, 1
      %p178 = por %p176, %p177
      %p179 = scmp.ne.s32.totalorder %s171, %s174
      %p180 = scmp.eq.s32.totalorder %s20, 0
      %p181 = por %p179, %p180
      %p182 = scmp.ne.s32.totalorder %s171, %s174
      %p183 = scmp.eq.s32.totalorder %s25, 1
      %p184 = por %p182, %p183
      %p185 = scmp.ne.s32.totalorder %s174, %s175
      %p186 = scmp.eq.s32.totalorder %s25, 0
      %p187 = por %p185, %p186
      %p188 = scmp.ne.s32.totalorder %s174, %s175
      %p189 = scmp.eq.s32.totalorder %s26, 1
      %p190 = por %p188, %p189
      %p192 = scmp.ne.s32.totalorder %s175, %s191
      %p193 = scmp.eq.s32.totalorder %s26, 0
      %p194 = por %p192, %p193
      %p195 = scmp.le.s32.totalorder 1, %s20
      %p196 = scmp.lt.s32.totalorder %s20, 3
      %p197 = pnand %p195, %p196
      %p198 = pneg %p197
      // Predicated region
      $region9: #{tpu_custom_call.1} parent=5 // pred_check
        _
      $region10: #{tpu_custom_call.1} parent=5 // pred_check_branch
        %200 = sbr.rel (%p197) target = $region12
      $region11: #{tpu_custom_call.1} parent=5 // pred_region
        %s201 = ssub.s32 %s20, 1
        // Predicated region
        $region13: #{tpu_custom_call.1} parent=11 // pred_check
          %p202 = pneg %p67
        $region14: #{tpu_custom_call.1} parent=11 // pred_check_branch
          %204 = sbr.rel (%p202) target = $region16
        $region15: #{tpu_custom_call.1} parent=11 // pred_region
          %s206 = ssub.s32 256, 256
          %207 = vsyncadd [#allocation9], %s206
          %s208 = sshll.u32 [#allocation8], 4
          %s209 = int_to_ptr.vmem [resolvable:$true] %s208
          %214 = dma.hbm_to_vmem [thread:$0]  %s1, 256, %s209, [#allocation9], 128, 128, 8
        $region16: #{tpu_custom_call.1} parent=11 // pred_fallthru
          _
        // Predicated region
        $region17: #{tpu_custom_call.1} parent=11 // pred_check
          %p215 = pneg %p88
        $region18: #{tpu_custom_call.1} parent=11 // pred_check_branch
          %217 = sbr.rel (%p215) target = $region20
        $region19: #{tpu_custom_call.1} parent=11 // pred_region
          %s219 = ssub.s32 128, 128
          %220 = vsyncadd [#allocation9], %s219
          %s222 = sshll.u32 [#allocation10], 4
          %s223 = int_to_ptr.vmem [resolvable:$true] %s222
          %225 = dma.hbm_to_vmem [thread:$0]  %s2, 128, %s223, [#allocation9]
        $region20: #{tpu_custom_call.1} parent=11 // pred_fallthru
          _
        // Predicated region
        $region21: #{tpu_custom_call.1} parent=11 // pred_check
          %p226 = pneg %p109
        $region22: #{tpu_custom_call.1} parent=11 // pred_check_branch
          %228 = sbr.rel (%p226) target = $region24
        $region23: #{tpu_custom_call.1} parent=11 // pred_region
          _
        $region24: #{tpu_custom_call.1} parent=11 // pred_fallthru
          _
      $region12: #{tpu_custom_call.1} parent=5 // pred_fallthru
        _
      %p229 = scmp.lt.s32.totalorder %s20, 2
      // Predicated region
      $region25: #{tpu_custom_call.1} parent=5 // pred_check
        %p230 = pneg %p229
      $region26: #{tpu_custom_call.1} parent=5 // pred_check_branch
        %232 = sbr.rel (%p230) target = $region28
      $region27: #{tpu_custom_call.1} parent=5 // pred_region
        // Predicated region
        $region29: #{tpu_custom_call.1} parent=27 // pred_check
          %p233 = pneg %p40
        $region30: #{tpu_custom_call.1} parent=27 // pred_check_branch
          %235 = sbr.rel (%p233) target = $region32
        $region31: #{tpu_custom_call.1} parent=27 // pred_region
          %s236 = sand.u32 %s30, 1
          %s237 = scalar_lea.sflag [#allocation6], %s236
          %s238 = sand.u32 %s30, 1
          %s239 = smul.addr %s238, 64
          %s240 = scalar_lea.vmem [#allocation5], %s239
          %s241 = smul.u32 4, %s20
          %s243 = ssub.s32 1024, 1024
          %244 = vsyncadd %s237, %s243
          %s245 = smul.addr %s241, 2
          %s246 = smul.addr %s245, 128
          %s247 = scalar_lea.hbm %s0, %s246
          %s248 = sshll.u32 %s240, 4
          %s249 = int_to_ptr.vmem [resolvable:$true] %s248
          %254 = dma.hbm_to_vmem [thread:$0]  %s247, 1024, %s249, %s237, 128, 128, 8
        $region32: #{tpu_custom_call.1} parent=27 // pred_fallthru
          _
      $region28: #{tpu_custom_call.1} parent=5 // pred_fallthru
        _
      %p255 = scmp.le.s32.totalorder 1, %s20
      %p256 = scmp.lt.s32.totalorder %s20, 3
      %p257 = pnand %p255, %p256
      %p258 = pneg %p257
      // Predicated region
      $region33: #{tpu_custom_call.1} parent=5 // pred_check
        _
      $region34: #{tpu_custom_call.1} parent=5 // pred_check_branch
        %260 = sbr.rel (%p257) target = $region36
      $region35: #{tpu_custom_call.1} parent=5 // pred_region
        %s261 = ssub.s32 %s20, 1
        %s262 = sand.u32 %s33, 1
        %s263 = scalar_lea.sflag [#allocation6], %s262
        %s264 = sand.u32 %s33, 1
        %s265 = smul.addr %s264, 64
        %s266 = scalar_lea.vmem [#allocation5], %s265
        // Predicated region
        $region37: #{tpu_custom_call.1} parent=35 // pred_check
          %p267 = pneg %p46
        $region38: #{tpu_custom_call.1} parent=35 // pred_check_branch
          %269 = sbr.rel (%p267) target = $region40
        $region39: #{tpu_custom_call.1} parent=35 // pred_region
          %270 = dma.done %s263, 1024
        $region40: #{tpu_custom_call.1} parent=35 // pred_fallthru
          _
        // Predicated region
        $region41: #{tpu_custom_call.1} parent=35 // pred_check
          %p271 = pneg %p67
        $region42: #{tpu_custom_call.1} parent=35 // pred_check_branch
          %273 = sbr.rel (%p271) target = $region44
        $region43: #{tpu_custom_call.1} parent=35 // pred_region
          %274 = dma.done [#allocation9], 256
        $region44: #{tpu_custom_call.1} parent=35 // pred_fallthru
          _
        // Predicated region
        $region45: #{tpu_custom_call.1} parent=35 // pred_check
          %p275 = pneg %p88
        $region46: #{tpu_custom_call.1} parent=35 // pred_check_branch
          %277 = sbr.rel (%p275) target = $region48
        $region47: #{tpu_custom_call.1} parent=35 // pred_region
          %278 = dma.done [#allocation9], 128
        $region48: #{tpu_custom_call.1} parent=35 // pred_fallthru
          _
        %s279 = sand.u32 %s33, 1
        %s280 = scalar_lea.sflag [#allocation6], %s279
        %s281 = sand.u32 %s33, 1
        %s282 = smul.addr %s281, 64
        %s283 = scalar_lea.vmem [#allocation5], %s282
        %p284 = pneg %p46
        %p285 = pneg %p43
        %p286 = pneg %p67
        %p287 = pneg %p64
        %p288 = pneg %p88
        %p289 = pneg %p85
        %p290 = pneg %p109
        %p291 = pneg %p106
        %p292 = pneg %p135
        %p293 = pneg %p132
        %s294 = sand.u32 %s122, 1
        %s295 = scalar_lea.sflag [#allocation7], %s294
        %s296 = sand.u32 %s122, 1
        %s297 = smul.addr %s296, 32
        %s298 = scalar_lea.vmem [#allocation11], %s297
        %p299 = pneg %p161
        %p300 = pneg %p158
        %s301 = smul.u32 4, %s25
        %p302 = scmp.lt.s32.totalorder %s301, 7
        %s303 = scalar_select %p302, %s301, 7
        %s304 = smul.addr %s303, 4
        %s305 = scalar_lea.vmem %s5, %s304
        %p306 = pneg %p187
        %p307 = pneg %p184
        %s308 = smul.u32 4, %s25
        %p309 = scmp.lt.s32.totalorder %s308, 7
        %s310 = scalar_select %p309, %s308, 7
        %s311 = smul.addr %s310, 2
        %s312 = scalar_lea.vmem %s6, %s311
        %s313 = smul.u32 4, %s25
        %s314 = smul.u32 4, %s25
        %s315 = smul.u32 4, %s25
        %p316 = scmp.lt.s32.totalorder %s315, 7
        %s317 = scalar_select %p316, %s315, 7
        %s318 = smul.addr %s317, 4
        %s319 = scalar_lea.vmem %s5, %s318
        %s320 = smul.u32 4, %s25
        %s321 = smul.u32 4, %s25
        %p322 = scmp.lt.s32.totalorder %s321, 7
        %s323 = scalar_select %p322, %s321, 7
        %s324 = smul.addr %s323, 2
        %s325 = scalar_lea.vmem %s6, %s324
        %s326 = smul.u32 4, %s25
        %v327 = vld [vmem:[%s266] sm:$0xff]
        %v328 = vld [vmem:[%s266 + $0x8] sm:$0xff]
        %v329 = vld [vmem:[%s266 + $0x10] sm:$0xff]
        %v330 = vld [vmem:[%s266 + $0x18] sm:$0xff]
        %v331 = vld [vmem:[%s266 + $0x20] sm:$0xff]
        %v332 = vld [vmem:[%s266 + $0x28] sm:$0xff]
        %v333 = vld [vmem:[%s266 + $0x30] sm:$0xff]
        %v334 = vld [vmem:[%s266 + $0x38] sm:$0xff]
        %v335 = vld [vmem:[#allocation8] sm:$0xff]
        %v336 = vld [vmem:[#allocation8 + $0x8] sm:$0xff]
        %vm337 = vcmask 130048
        %v339 = vsel %vm337, %v327, 0
        %v342 = vsel %vm337, %v328, 0
        %v345 = vsel %vm337, %v329, 0
        %v348 = vsel %vm337, %v330, 0
        %v351 = vsel %vm337, %v331, 0
        %v354 = vsel %vm337, %v332, 0
        %v357 = vsel %vm337, %v333, 0
        %v360 = vsel %vm337, %v334, 0
        %362 = vmatprep.subr.mxu0 0.0
        %363 = vmatpush1.msra.mxu0 %v335
        %364 = vmatprep.subr.mxu0 0.0
        %365 = vmatpush1.msra.mxu0 %v336
        %366 = vmatprep.subr.mxu0 0.0
        %367 = vmatpush1.msra.mxu0 0.0
        %368 = vmatprep.subr.mxu0 0.0
        %369 = vmatpush1.msra.mxu0 0.0
        %370 = vmatprep.subr.mxu0 0.0
        %371 = vmatpush1.msra.mxu0 0.0
        %372 = vmatprep.subr.mxu0 0.0
        %373 = vmatpush1.msra.mxu0 0.0
        %374 = vmatprep.subr.mxu0 0.0
        %375 = vmatpush1.msra.mxu0 0.0
        %376 = vmatprep.subr.mxu0 0.0
        %377 = vmatpush1.msra.mxu0 0.0
        %378 = vmatprep.subr.mxu0 0.0
        %379 = vmatpush1.msra.mxu0 0.0
        %380 = vmatprep.subr.mxu0 0.0
        %381 = vmatpush1.msra.mxu0 0.0
        %382 = vmatprep.subr.mxu0 0.0
        %383 = vmatpush1.msra.mxu0 0.0
        %384 = vmatprep.subr.mxu0 0.0
        %385 = vmatpush1.msra.mxu0 0.0
        %386 = vmatprep.subr.mxu0 0.0
        %387 = vmatpush1.msra.mxu0 0.0
        %388 = vmatprep.subr.mxu0 0.0
        %389 = vmatpush1.msra.mxu0 0.0
        %390 = vmatprep.subr.mxu0 0.0
        %391 = vmatpush1.msra.mxu0 0.0
        %392 = vmatprep.subr.mxu0 0.0
        %393 = vmatpush1.msra.mxu0 0.0
        %394 = vmatprep.subr.mxu0 0.0
        %395 = vmatpush1.msra.mxu0 0.0
        %396 = vmatprep.subr.mxu0 0.0
        %397 = vmatpush1.msra.mxu0 0.0
        %398 = vmatprep.subr.mxu0 0.0
        %399 = vmatpush1.msra.mxu0 0.0
        %400 = vmatprep.subr.mxu0 0.0
        %401 = vmatpush1.msra.mxu0 0.0
        %402 = vmatprep.subr.mxu0 0.0
        %403 = vmatpush1.msra.mxu0 0.0
        %404 = vmatprep.subr.mxu0 0.0
        %405 = vmatpush1.msra.mxu0 0.0
        %406 = vmatprep.subr.mxu0 0.0
        %407 = vmatpush1.msra.mxu0 0.0
        %408 = vmatprep.subr.mxu0 0.0
        %409 = vmatpush1.msra.mxu0 0.0
        %410 = vmatprep.subr.mxu0 0.0
        %411 = vmatpush1.msra.mxu0 0.0
        %412 = vmatprep.subr.mxu0 0.0
        %413 = vmatpush1.msra.mxu0 0.0
        %414 = vmatprep.subr.mxu0 0.0
        %415 = vmatpush1.msra.mxu0 0.0
        %416 = vmatprep.subr.mxu0 0.0
        %417 = vmatpush1.msra.mxu0 0.0
        %418 = vmatprep.subr.mxu0 0.0
        %419 = vmatpush1.msra.mxu0 0.0
        %420 = vmatprep.subr.mxu0 0.0
        %421 = vmatpush1.msra.mxu0 0.0
        %422 = vmatprep.subr.mxu0 0.0
        %423 = vmatpush1.msra.mxu0 0.0
        %424 = vmatprep.subr.mxu0 0.0
        %425 = vmatpush1.msra.mxu0 0.0
        %426 = vmatprep.mubr.f32.mxu0 0.0
        %427 = vmatmul.mubr.f32.gmra.mrb[0].mxu0 %v339
        %v428 = vpop.f32.mrb[0].mxu0
        %v429 = vadd.f32 0.0, %v428
        %v430 = vpop.f32.mrb[0].mxu0
        %431 = vmatprep.mubr.f32.mxu0 0.0
        %432 = vmatmul.mubr.f32.gmra.mrb[0].mxu0 %v342
        %v433 = vpop.f32.mrb[0].mxu0
        %v434 = vadd.f32 0.0, %v433
        %v435 = vpop.f32.mrb[0].mxu0
        %436 = vmatprep.mubr.f32.mxu0 0.0
        %437 = vmatmul.mubr.f32.gmra.mrb[0].mxu0 %v345
        %v438 = vpop.f32.mrb[0].mxu0
        %v439 = vadd.f32 0.0, %v438
        %v440 = vpop.f32.mrb[0].mxu0
        %441 = vmatprep.mubr.f32.mxu0 0.0
        %442 = vmatmul.mubr.f32.gmra.mrb[0].mxu0 %v348
        %v443 = vpop.f32.mrb[0].mxu0
        %v444 = vadd.f32 0.0, %v443
        %v445 = vpop.f32.mrb[0].mxu0
        %446 = vmatprep.mubr.f32.mxu0 0.0
        %447 = vmatmul.mubr.f32.gmra.mrb[0].mxu0 %v351
        %v448 = vpop.f32.mrb[0].mxu0
        %v449 = vadd.f32 0.0, %v448
        %v450 = vpop.f32.mrb[0].mxu0
        %451 = vmatprep.mubr.f32.mxu0 0.0
        %452 = vmatmul.mubr.f32.gmra.mrb[0].mxu0 %v354
        %v453 = vpop.f32.mrb[0].mxu0
        %v454 = vadd.f32 0.0, %v453
        %v455 = vpop.f32.mrb[0].mxu0
        %456 = vmatprep.mubr.f32.mxu0 0.0
        %457 = vmatmul.mubr.f32.gmra.mrb[0].mxu0 %v357
        %v458 = vpop.f32.mrb[0].mxu0
        %v459 = vadd.f32 0.0, %v458
        %v460 = vpop.f32.mrb[0].mxu0
        %461 = vmatprep.mubr.f32.mxu0 0.0
        %462 = vmatmul.mubr.f32.gmra.mrb[0].mxu0 %v360
        %v463 = vpop.f32.mrb[0].mxu0
        %v464 = vadd.f32 0.0, %v463
        %v465 = vpop.f32.mrb[0].mxu0
        %466 = vdwg.mxu0
        %v467 = vlaneseq
        %v468 = vshrl.u32 %v467, 7
        %v469 = vadd.s32 %v468, 8
        %v470 = vrot.slane %v429, 7
        %v471 = vrot.slane %v434, 7
        %v472 = vrot.slane %v439, 7
        %v473 = vrot.slane %v444, 7
        %v474 = vrot.slane %v449, 7
        %v475 = vrot.slane %v454, 7
        %v476 = vrot.slane %v459, 7
        %v477 = vrot.slane %v464, 7
        %vm478 = vcmp.lt.s32.totalorder %v468, 1
        %v479 = vsel %vm478, %v476, %v477
        %v480 = vsel %vm478, %v475, %v476
        %v481 = vsel %vm478, %v474, %v475
        %v482 = vsel %vm478, %v473, %v474
        %v483 = vsel %vm478, %v472, %v473
        %v484 = vsel %vm478, %v471, %v472
        %v485 = vsel %vm478, %v470, %v471
        %v486 = vsel %vm478, %v477, %v470
        %v487 = vrot.slane %v429, 1
        %v488 = vrot.slane %v434, 1
        %v489 = vrot.slane %v439, 1
        %v490 = vrot.slane %v444, 1
        %v491 = vrot.slane %v449, 1
        %v492 = vrot.slane %v454, 1
        %v493 = vrot.slane %v459, 1
        %v494 = vrot.slane %v464, 1
        %vm495 = vcmp.lt.s32.totalorder %v468, 7
        %v496 = vsel %vm495, %v493, %v494
        %v497 = vsel %vm495, %v492, %v493
        %v498 = vsel %vm495, %v491, %v492
        %v499 = vsel %vm495, %v490, %v491
        %v500 = vsel %vm495, %v489, %v490
        %v501 = vsel %vm495, %v488, %v489
        %v502 = vsel %vm495, %v487, %v488
        %v503 = vsel %vm495, %v494, %v487
        %vm504 = vcmp.eq.s32.totalorder %v468, 0
        %vm505 = vcmp.eq.s32.totalorder %v469, 0
        %v506 = vsel %vm504, %v502, %v486
        %v507 = vsel %vm505, %v501, %v485
        %v508 = vsel %vm504, %v500, %v484
        %v509 = vsel %vm505, %v499, %v483
        %v510 = vsel %vm504, %v498, %v482
        %v511 = vsel %vm505, %v497, %v481
        %v512 = vsel %vm504, %v496, %v480
        %v513 = vsel %vm505, %v503, %v479
        %vm514 = vcmp.eq.s32.totalorder %v468, 15
        %vm515 = vcmp.eq.s32.totalorder %v469, 15
        %v516 = vsel %vm514, %v486, %v502
        %v517 = vsel %vm515, %v485, %v501
        %v518 = vsel %vm514, %v484, %v500
        %v519 = vsel %vm515, %v483, %v499
        %v520 = vsel %vm514, %v482, %v498
        %v521 = vsel %vm515, %v481, %v497
        %v522 = vsel %vm514, %v480, %v496
        %v523 = vsel %vm515, %v479, %v503
        %v524 = vadd.f32 %v506, %v516
        %v525 = vadd.f32 %v507, %v517
        %v526 = vadd.f32 %v508, %v518
        %v527 = vadd.f32 %v509, %v519
        %v528 = vadd.f32 %v510, %v520
        %v529 = vadd.f32 %v511, %v521
        %v530 = vadd.f32 %v512, %v522
        %v531 = vadd.f32 %v513, %v523
        %v532 = vmul.f32 %v524, 0.0751
        %v533 = vmul.f32 %v525, 0.0751
        %v534 = vmul.f32 %v526, 0.0751
        %v535 = vmul.f32 %v527, 0.0751
        %v536 = vmul.f32 %v528, 0.0751
        %v537 = vmul.f32 %v529, 0.0751
        %v538 = vmul.f32 %v530, 0.0751
        %v539 = vmul.f32 %v531, 0.0751
        %v540 = vmul.f32 %v429, 0.1238
        %v541 = vmul.f32 %v434, 0.1238
        %v542 = vmul.f32 %v439, 0.1238
        %v543 = vmul.f32 %v444, 0.1238
        %v544 = vmul.f32 %v449, 0.1238
        %v545 = vmul.f32 %v454, 0.1238
        %v546 = vmul.f32 %v459, 0.1238
        %v547 = vmul.f32 %v464, 0.1238
        %v548 = vadd.f32 %v532, %v540
        %v549 = vadd.f32 %v533, %v541
        %v550 = vadd.f32 %v534, %v542
        %v551 = vadd.f32 %v535, %v543
        %v552 = vadd.f32 %v536, %v544
        %v553 = vadd.f32 %v537, %v545
        %v554 = vadd.f32 %v538, %v546
        %v555 = vadd.f32 %v539, %v547
        %564 = vrot.lane.b32.xlu0 %v429, 120
        %v565 = vpop.permute.xlu0 %564
        %566 = vrot.lane.b32.xlu0 %v434, 120
        %v567 = vpop.permute.xlu0 %566
        %568 = vrot.lane.b32.xlu0 %v439, 120
        %v569 = vpop.permute.xlu0 %568
        %570 = vrot.lane.b32.xlu0 %v444, 120
        %v571 = vpop.permute.xlu0 %570
        %572 = vrot.lane.b32.xlu0 %v449, 120
        %v573 = vpop.permute.xlu0 %572
        %574 = vrot.lane.b32.xlu0 %v454, 120
        %v575 = vpop.permute.xlu0 %574
        %576 = vrot.lane.b32.xlu0 %v459, 120
        %v577 = vpop.permute.xlu0 %576
        %578 = vrot.lane.b32.xlu0 %v464, 120
        %v579 = vpop.permute.xlu0 %578
        %v588 = vrot.slane %v565, 7
        %v589 = vrot.slane %v567, 7
        %v590 = vrot.slane %v569, 7
        %v591 = vrot.slane %v571, 7
        %v592 = vrot.slane %v573, 7
        %v593 = vrot.slane %v575, 7
        %v594 = vrot.slane %v577, 7
        %v595 = vrot.slane %v579, 7
        %v596 = vsel %vm478, %v594, %v595
        %v597 = vsel %vm478, %v593, %v594
        %v598 = vsel %vm478, %v592, %v593
        %v599 = vsel %vm478, %v591, %v592
        %v600 = vsel %vm478, %v590, %v591
        %v601 = vsel %vm478, %v589, %v590
        %v602 = vsel %vm478, %v588, %v589
        %v603 = vsel %vm478, %v595, %v588
        %v604 = vrot.slane %v565, 1
        %v605 = vrot.slane %v567, 1
        %v606 = vrot.slane %v569, 1
        %v607 = vrot.slane %v571, 1
        %v608 = vrot.slane %v573, 1
        %v609 = vrot.slane %v575, 1
        %v610 = vrot.slane %v577, 1
        %v611 = vrot.slane %v579, 1
        %v612 = vsel %vm495, %v610, %v611
        %v613 = vsel %vm495, %v609, %v610
        %v614 = vsel %vm495, %v608, %v609
        %v615 = vsel %vm495, %v607, %v608
        %v616 = vsel %vm495, %v606, %v607
        %v617 = vsel %vm495, %v605, %v606
        %v618 = vsel %vm495, %v604, %v605
        %v619 = vsel %vm495, %v611, %v604
        %v620 = vsel %vm504, %v618, %v603
        %v621 = vsel %vm505, %v617, %v602
        %v622 = vsel %vm504, %v616, %v601
        %v623 = vsel %vm505, %v615, %v600
        %v624 = vsel %vm504, %v614, %v599
        %v625 = vsel %vm505, %v613, %v598
        %v626 = vsel %vm504, %v612, %v597
        %v627 = vsel %vm505, %v619, %v596
        %v628 = vsel %vm514, %v603, %v618
        %v629 = vsel %vm515, %v602, %v617
        %v630 = vsel %vm514, %v601, %v616
        %v631 = vsel %vm515, %v600, %v615
        %v632 = vsel %vm514, %v599, %v614
        %v633 = vsel %vm515, %v598, %v613
        %v634 = vsel %vm514, %v597, %v612
        %v635 = vsel %vm515, %v596, %v619
        %v636 = vadd.f32 %v620, %v628
        %v637 = vadd.f32 %v621, %v629
        %v638 = vadd.f32 %v622, %v630
        %v639 = vadd.f32 %v623, %v631
        %v640 = vadd.f32 %v624, %v632
        %v641 = vadd.f32 %v625, %v633
        %v642 = vadd.f32 %v626, %v634
        %v643 = vadd.f32 %v627, %v635
        %v644 = vmul.f32 %v636, 0.1238
        %v645 = vmul.f32 %v637, 0.1238
        %v646 = vmul.f32 %v638, 0.1238
        %v647 = vmul.f32 %v639, 0.1238
        %v648 = vmul.f32 %v640, 0.1238
        %v649 = vmul.f32 %v641, 0.1238
        %v650 = vmul.f32 %v642, 0.1238
        %v651 = vmul.f32 %v643, 0.1238
        %v652 = vadd.f32 %v548, %v644
        %v653 = vadd.f32 %v549, %v645
        %v654 = vadd.f32 %v550, %v646
        %v655 = vadd.f32 %v551, %v647
        %v656 = vadd.f32 %v552, %v648
        %v657 = vadd.f32 %v553, %v649
        %v658 = vadd.f32 %v554, %v650
        %v659 = vadd.f32 %v555, %v651
        %v660 = vmul.f32 %v429, 0.2042
        %v661 = vmul.f32 %v434, 0.2042
        %v662 = vmul.f32 %v439, 0.2042
        %v663 = vmul.f32 %v444, 0.2042
        %v664 = vmul.f32 %v449, 0.2042
        %v665 = vmul.f32 %v454, 0.2042
        %v666 = vmul.f32 %v459, 0.2042
        %v667 = vmul.f32 %v464, 0.2042
        %676 = vrot.lane.b32.xlu0 %v660, 120
        %v677 = vpop.permute.xlu0 %676
        %678 = vrot.lane.b32.xlu0 %v661, 120
        %v679 = vpop.permute.xlu0 %678
        %680 = vrot.lane.b32.xlu0 %v662, 120
        %v681 = vpop.permute.xlu0 %680
        %682 = vrot.lane.b32.xlu0 %v663, 120
        %v683 = vpop.permute.xlu0 %682
        %684 = vrot.lane.b32.xlu0 %v664, 120
        %v685 = vpop.permute.xlu0 %684
        %686 = vrot.lane.b32.xlu0 %v665, 120
        %v687 = vpop.permute.xlu0 %686
        %688 = vrot.lane.b32.xlu0 %v666, 120
        %v689 = vpop.permute.xlu0 %688
        %690 = vrot.lane.b32.xlu0 %v667, 120
        %v691 = vpop.permute.xlu0 %690
        %v700 = vadd.f32 %v652, %v677
        %v701 = vadd.f32 %v653, %v679
        %v702 = vadd.f32 %v654, %v681
        %v703 = vadd.f32 %v655, %v683
        %v704 = vadd.f32 %v656, %v685
        %v705 = vadd.f32 %v657, %v687
        %v706 = vadd.f32 %v658, %v689
        %v707 = vadd.f32 %v659, %v691
        %vm708 = vcmask 64512
        %709 = vst.msk [vmem:[#allocation2] sm:$0xff] %vm708, %v700
        %710 = vst.msk [vmem:[#allocation2 + $0x8] sm:$0xff] %vm708, %v701
        %711 = vst.msk [vmem:[#allocation2 + $0x10] sm:$0xff] %vm708, %v702
        %712 = vst.msk [vmem:[#allocation2 + $0x18] sm:$0xff] %vm708, %v703
        %713 = vst.msk [vmem:[#allocation2 + $0x20] sm:$0xff] %vm708, %v704
        %714 = vst.msk [vmem:[#allocation2 + $0x28] sm:$0xff] %vm708, %v705
        %715 = vst.msk [vmem:[#allocation2 + $0x30] sm:$0xff] %vm708, %v706
        %716 = vst.msk [vmem:[#allocation2 + $0x38] sm:$0xff] %vm708, %v707
        %v717 = vld [vmem:[#allocation2] ss:$2 sm:$0xff]
        %s718 = scalar_lea.vmem [#allocation2], 16
        %v719 = vld [vmem:[%s718] ss:$2 sm:$0xff]
        %s720 = scalar_lea.vmem [#allocation2], 32
        %v721 = vld [vmem:[%s720] ss:$2 sm:$0xff]
        %s722 = scalar_lea.vmem [#allocation2], 48
        %v723 = vld [vmem:[%s722] ss:$2 sm:$0xff]
        %s724 = scalar_lea.vmem [#allocation2], 1
        %v725 = vld [vmem:[%s724] ss:$2 sm:$0xff]
        %s726 = scalar_lea.vmem [#allocation2], 17
        %v727 = vld [vmem:[%s726] ss:$2 sm:$0xff]
        %s728 = scalar_lea.vmem [#allocation2], 33
        %v729 = vld [vmem:[%s728] ss:$2 sm:$0xff]
        %s730 = scalar_lea.vmem [#allocation2], 49
        %v731 = vld [vmem:[%s730] ss:$2 sm:$0xff]
        %v732 = vadd.f32 %v717, %v725
        %v733 = vadd.f32 %v719, %v727
        %v734 = vadd.f32 %v721, %v729
        %v735 = vadd.f32 %v723, %v731
        %v736 = vmul.f32 %v732, 0.5
        %v737 = vmul.f32 %v733, 0.5
        %v738 = vmul.f32 %v734, 0.5
        %v739 = vmul.f32 %v735, 0.5
        %740 = vst.msk [vmem:[%s298] sm:$0xff] %vm708, %v736
        %741 = vst.msk [vmem:[%s298 + $0x8] sm:$0xff] %vm708, %v737
        %742 = vst.msk [vmem:[%s298 + $0x10] sm:$0xff] %vm708, %v738
        %743 = vst.msk [vmem:[%s298 + $0x18] sm:$0xff] %vm708, %v739
        %v744 = vld [vmem:[%s298] sm:$0xff]
        %v745 = vld [vmem:[%s298 + $0x8] sm:$0xff]
        %v746 = vld [vmem:[%s298 + $0x10] sm:$0xff]
        %v747 = vld [vmem:[%s298 + $0x18] sm:$0xff]
        %v748 = vld [vmem:[#allocation10] sm:$0xff]
        %v750 = vsel %vm708, %v744, 0
        %v753 = vsel %vm708, %v745, 0
        %v756 = vsel %vm708, %v746, 0
        %v759 = vsel %vm708, %v747, 0
        %761 = vmatprep.subr.mxu0 0.0
        %762 = vmatpush1.msra.mxu0 %v748
        %763 = vmatprep.subr.mxu0 0.0
        %764 = vmatpush1.msra.mxu0 0.0
        %765 = vmatprep.subr.mxu0 0.0
        %766 = vmatpush1.msra.mxu0 0.0
        %767 = vmatprep.subr.mxu0 0.0
        %768 = vmatpush1.msra.mxu0 0.0
        %769 = vmatprep.subr.mxu0 0.0
        %770 = vmatpush1.msra.mxu0 0.0
        %771 = vmatprep.subr.mxu0 0.0
        %772 = vmatpush1.msra.mxu0 0.0
        %773 = vmatprep.subr.mxu0 0.0
        %774 = vmatpush1.msra.mxu0 0.0
        %775 = vmatprep.subr.mxu0 0.0
        %776 = vmatpush1.msra.mxu0 0.0
        %777 = vmatprep.subr.mxu0 0.0
        %778 = vmatpush1.msra.mxu0 0.0
        %779 = vmatprep.subr.mxu0 0.0
        %780 = vmatpush1.msra.mxu0 0.0
        %781 = vmatprep.subr.mxu0 0.0
        %782 = vmatpush1.msra.mxu0 0.0
        %783 = vmatprep.subr.mxu0 0.0
        %784 = vmatpush1.msra.mxu0 0.0
        %785 = vmatprep.subr.mxu0 0.0
        %786 = vmatpush1.msra.mxu0 0.0
        %787 = vmatprep.subr.mxu0 0.0
        %788 = vmatpush1.msra.mxu0 0.0
        %789 = vmatprep.subr.mxu0 0.0
        %790 = vmatpush1.msra.mxu0 0.0
        %791 = vmatprep.subr.mxu0 0.0
        %792 = vmatpush1.msra.mxu0 0.0
        %793 = vmatprep.subr.mxu0 0.0
        %794 = vmatpush1.msra.mxu0 0.0
        %795 = vmatprep.subr.mxu0 0.0
        %796 = vmatpush1.msra.mxu0 0.0
        %797 = vmatprep.subr.mxu0 0.0
        %798 = vmatpush1.msra.mxu0 0.0
        %799 = vmatprep.subr.mxu0 0.0
        %800 = vmatpush1.msra.mxu0 0.0
        %801 = vmatprep.subr.mxu0 0.0
        %802 = vmatpush1.msra.mxu0 0.0
        %803 = vmatprep.subr.mxu0 0.0
        %804 = vmatpush1.msra.mxu0 0.0
        %805 = vmatprep.subr.mxu0 0.0
        %806 = vmatpush1.msra.mxu0 0.0
        %807 = vmatprep.subr.mxu0 0.0
        %808 = vmatpush1.msra.mxu0 0.0
        %809 = vmatprep.subr.mxu0 0.0
        %810 = vmatpush1.msra.mxu0 0.0
        %811 = vmatprep.subr.mxu0 0.0
        %812 = vmatpush1.msra.mxu0 0.0
        %813 = vmatprep.subr.mxu0 0.0
        %814 = vmatpush1.msra.mxu0 0.0
        %815 = vmatprep.subr.mxu0 0.0
        %816 = vmatpush1.msra.mxu0 0.0
        %817 = vmatprep.subr.mxu0 0.0
        %818 = vmatpush1.msra.mxu0 0.0
        %819 = vmatprep.subr.mxu0 0.0
        %820 = vmatpush1.msra.mxu0 0.0
        %821 = vmatprep.subr.mxu0 0.0
        %822 = vmatpush1.msra.mxu0 0.0
        %823 = vmatprep.subr.mxu0 0.0
        %824 = vmatpush1.msra.mxu0 0.0
        %825 = vmatprep.mubr.f32.mxu0 0.0
        %826 = vmatmul.mubr.f32.gmra.mrb[0].mxu0 %v750
        %v827 = vpop.f32.mrb[0].mxu0
        %v828 = vadd.f32 0.0, %v827
        %v829 = vpop.f32.mrb[0].mxu0
        %830 = vmatprep.mubr.f32.mxu0 0.0
        %831 = vmatmul.mubr.f32.gmra.mrb[0].mxu0 %v753
        %v832 = vpop.f32.mrb[0].mxu0
        %v833 = vadd.f32 0.0, %v832
        %v834 = vpop.f32.mrb[0].mxu0
        %835 = vmatprep.mubr.f32.mxu0 0.0
        %836 = vmatmul.mubr.f32.gmra.mrb[0].mxu0 %v756
        %v837 = vpop.f32.mrb[0].mxu0
        %v838 = vadd.f32 0.0, %v837
        %v839 = vpop.f32.mrb[0].mxu0
        %840 = vmatprep.mubr.f32.mxu0 0.0
        %841 = vmatmul.mubr.f32.gmra.mrb[0].mxu0 %v759
        %v842 = vpop.f32.mrb[0].mxu0
        %v843 = vadd.f32 0.0, %v842
        %v844 = vpop.f32.mrb[0].mxu0
        %845 = vdwg.mxu0
        %v846 = vrot.slane %v828, 7
        %v847 = vrot.slane %v833, 7
        %v848 = vrot.slane %v838, 7
        %v849 = vrot.slane %v843, 7
        %v850 = vsel %vm478, %v848, %v849
        %v851 = vsel %vm478, %v847, %v848
        %v852 = vsel %vm478, %v846, %v847
        %v853 = vsel %vm478, %v849, %v846
        %v854 = vrot.slane %v828, 1
        %v855 = vrot.slane %v833, 1
        %v856 = vrot.slane %v838, 1
        %v857 = vrot.slane %v843, 1
        %v858 = vsel %vm495, %v856, %v857
        %v859 = vsel %vm495, %v855, %v856
        %v860 = vsel %vm495, %v854, %v855
        %v861 = vsel %vm495, %v857, %v854
        %v862 = vsel %vm504, %v860, %v853
        %v863 = vsel %vm504, %v859, %v852
        %v864 = vsel %vm504, %v858, %v851
        %v865 = vsel %vm504, %v861, %v850
        %vm866 = vcmp.eq.s32.totalorder %v468, 7
        %v867 = vsel %vm866, %v853, %v860
        %v868 = vsel %vm866, %v852, %v859
        %v869 = vsel %vm866, %v851, %v858
        %v870 = vsel %vm866, %v850, %v861
        %v871 = vadd.f32 %v862, %v867
        %v872 = vadd.f32 %v863, %v868
        %v873 = vadd.f32 %v864, %v869
        %v874 = vadd.f32 %v865, %v870
        %v875 = vmul.f32 %v871, 0.0751
        %v876 = vmul.f32 %v872, 0.0751
        %v877 = vmul.f32 %v873, 0.0751
        %v878 = vmul.f32 %v874, 0.0751
        %v879 = vmul.f32 %v828, 0.1238
        %v880 = vmul.f32 %v833, 0.1238
        %v881 = vmul.f32 %v838, 0.1238
        %v882 = vmul.f32 %v843, 0.1238
        %v883 = vadd.f32 %v875, %v879
        %v884 = vadd.f32 %v876, %v880
        %v885 = vadd.f32 %v877, %v881
        %v886 = vadd.f32 %v878, %v882
        %891 = vrot.lane.b32.xlu0 %v828, 124
        %v892 = vpop.permute.xlu0 %891
        %893 = vrot.lane.b32.xlu0 %v833, 124
        %v894 = vpop.permute.xlu0 %893
        %895 = vrot.lane.b32.xlu0 %v838, 124
        %v896 = vpop.permute.xlu0 %895
        %897 = vrot.lane.b32.xlu0 %v843, 124
        %v898 = vpop.permute.xlu0 %897
        %v903 = vrot.slane %v892, 7
        %v904 = vrot.slane %v894, 7
        %v905 = vrot.slane %v896, 7
        %v906 = vrot.slane %v898, 7
        %v907 = vsel %vm478, %v905, %v906
        %v908 = vsel %vm478, %v904, %v905
        %v909 = vsel %vm478, %v903, %v904
        %v910 = vsel %vm478, %v906, %v903
        %v911 = vrot.slane %v892, 1
        %v912 = vrot.slane %v894, 1
        %v913 = vrot.slane %v896, 1
        %v914 = vrot.slane %v898, 1
        %v915 = vsel %vm495, %v913, %v914
        %v916 = vsel %vm495, %v912, %v913
        %v917 = vsel %vm495, %v911, %v912
        %v918 = vsel %vm495, %v914, %v911
        %v919 = vsel %vm504, %v917, %v910
        %v920 = vsel %vm504, %v916, %v909
        %v921 = vsel %vm504, %v915, %v908
        %v922 = vsel %vm504, %v918, %v907
        %v923 = vsel %vm866, %v910, %v917
        %v924 = vsel %vm866, %v909, %v916
        %v925 = vsel %vm866, %v908, %v915
        %v926 = vsel %vm866, %v907, %v918
        %v927 = vadd.f32 %v919, %v923
        %v928 = vadd.f32 %v920, %v924
        %v929 = vadd.f32 %v921, %v925
        %v930 = vadd.f32 %v922, %v926
        %v931 = vmul.f32 %v927, 0.1238
        %v932 = vmul.f32 %v928, 0.1238
        %v933 = vmul.f32 %v929, 0.1238
        %v934 = vmul.f32 %v930, 0.1238
        %v935 = vadd.f32 %v883, %v931
        %v936 = vadd.f32 %v884, %v932
        %v937 = vadd.f32 %v885, %v933
        %v938 = vadd.f32 %v886, %v934
        %v939 = vmul.f32 %v828, 0.2042
        %v940 = vmul.f32 %v833, 0.2042
        %v941 = vmul.f32 %v838, 0.2042
        %v942 = vmul.f32 %v843, 0.2042
        %947 = vrot.lane.b32.xlu0 %v939, 124
        %v948 = vpop.permute.xlu0 %947
        %949 = vrot.lane.b32.xlu0 %v940, 124
        %v950 = vpop.permute.xlu0 %949
        %951 = vrot.lane.b32.xlu0 %v941, 124
        %v952 = vpop.permute.xlu0 %951
        %953 = vrot.lane.b32.xlu0 %v942, 124
        %v954 = vpop.permute.xlu0 %953
        %v959 = vadd.f32 %v935, %v948
        %v960 = vadd.f32 %v936, %v950
        %v961 = vadd.f32 %v937, %v952
        %v962 = vadd.f32 %v938, %v954
        %vm963 = vcmask 31744
        %964 = vst.msk [vmem:[#allocation3] sm:$0xff] %vm963, %v959
        %965 = vst.msk [vmem:[#allocation3 + $0x8] sm:$0xff] %vm963, %v960
        %966 = vst.msk [vmem:[#allocation3 + $0x10] sm:$0xff] %vm963, %v961
        %967 = vst.msk [vmem:[#allocation3 + $0x18] sm:$0xff] %vm963, %v962
        %v968 = vld [vmem:[#allocation3] ss:$2 sm:$0xff]
        %s969 = scalar_lea.vmem [#allocation3], 16
        %v970 = vld [vmem:[%s969] ss:$2 sm:$0xff]
        %s971 = scalar_lea.vmem [#allocation3], 1
        %v972 = vld [vmem:[%s971] ss:$2 sm:$0xff]
        %s973 = scalar_lea.vmem [#allocation3], 17
        %v974 = vld [vmem:[%s973] ss:$2 sm:$0xff]
        %v975 = vadd.f32 %v968, %v972
        %v976 = vadd.f32 %v970, %v974
        %v977 = vmul.f32 %v975, 0.5
        %v978 = vmul.f32 %v976, 0.5
        %v981 = vcombine.high %v977, %v977
        %v982 = vcombine.high %v978, %v978
        %vm985 = vcmask 27648
        %986 = vst.msk [vmem:[%s319] sm:$0xf] %vm985, %v977
        %987 = vst.msk [vmem:[%s319 + $0x4] sm:$0xf] %vm985, %v981
        %988 = vst.msk [vmem:[%s319 + $0x8] sm:$0xf] %vm985, %v978
        %989 = vst.msk [vmem:[%s319 + $0xc] sm:$0xf] %vm985, %v982
        %v990 = vld [vmem:[%s319] sm:$0xf]
        %v991 = vld [vmem:[%s319 + $0x4] sm:$0xf]
        %v992 = vld [vmem:[%s319 + $0x8] sm:$0xf]
        %v993 = vld [vmem:[%s319 + $0xc] sm:$0xf]
        %v994 = vld [vmem:[%s3] sm:$0xf]
        %v999 = vcombine.low %v990, %v991
        %v1000 = vcombine.low %v992, %v993
        %v1001 = vsel %vm963, %v999, 0
        %v1003 = vsel %vm963, %v1000, 0
        %vm1005 = vcmask 1043456
        %v1007 = vsel %vm1005, %v994, 0
        %1009 = vmatprep.subr.mxu0 0.0
        %1010 = vmatpush1.msra.mxu0 %v1007
        %1011 = vmatprep.subr.mxu0 0.0
        %1012 = vmatpush1.msra.mxu0 0.0
        %1013 = vmatprep.subr.mxu0 0.0
        %1014 = vmatpush1.msra.mxu0 0.0
        %1015 = vmatprep.subr.mxu0 0.0
        %1016 = vmatpush1.msra.mxu0 0.0
        %1017 = vmatprep.subr.mxu0 0.0
        %1018 = vmatpush1.msra.mxu0 0.0
        %1019 = vmatprep.subr.mxu0 0.0
        %1020 = vmatpush1.msra.mxu0 0.0
        %1021 = vmatprep.subr.mxu0 0.0
        %1022 = vmatpush1.msra.mxu0 0.0
        %1023 = vmatprep.subr.mxu0 0.0
        %1024 = vmatpush1.msra.mxu0 0.0
        %1025 = vmatprep.subr.mxu0 0.0
        %1026 = vmatpush1.msra.mxu0 0.0
        %1027 = vmatprep.subr.mxu0 0.0
        %1028 = vmatpush1.msra.mxu0 0.0
        %1029 = vmatprep.subr.mxu0 0.0
        %1030 = vmatpush1.msra.mxu0 0.0
        %1031 = vmatprep.subr.mxu0 0.0
        %1032 = vmatpush1.msra.mxu0 0.0
        %1033 = vmatprep.subr.mxu0 0.0
        %1034 = vmatpush1.msra.mxu0 0.0
        %1035 = vmatprep.subr.mxu0 0.0
        %1036 = vmatpush1.msra.mxu0 0.0
        %1037 = vmatprep.subr.mxu0 0.0
        %1038 = vmatpush1.msra.mxu0 0.0
        %1039 = vmatprep.subr.mxu0 0.0
        %1040 = vmatpush1.msra.mxu0 0.0
        %1041 = vmatprep.subr.mxu0 0.0
        %1042 = vmatpush1.msra.mxu0 0.0
        %1043 = vmatprep.subr.mxu0 0.0
        %1044 = vmatpush1.msra.mxu0 0.0
        %1045 = vmatprep.subr.mxu0 0.0
        %1046 = vmatpush1.msra.mxu0 0.0
        %1047 = vmatprep.subr.mxu0 0.0
        %1048 = vmatpush1.msra.mxu0 0.0
        %1049 = vmatprep.subr.mxu0 0.0
        %1050 = vmatpush1.msra.mxu0 0.0
        %1051 = vmatprep.subr.mxu0 0.0
        %1052 = vmatpush1.msra.mxu0 0.0
        %1053 = vmatprep.subr.mxu0 0.0
        %1054 = vmatpush1.msra.mxu0 0.0
        %1055 = vmatprep.subr.mxu0 0.0
        %1056 = vmatpush1.msra.mxu0 0.0
        %1057 = vmatprep.subr.mxu0 0.0
        %1058 = vmatpush1.msra.mxu0 0.0
        %1059 = vmatprep.subr.mxu0 0.0
        %1060 = vmatpush1.msra.mxu0 0.0
        %1061 = vmatprep.subr.mxu0 0.0
        %1062 = vmatpush1.msra.mxu0 0.0
        %1063 = vmatprep.subr.mxu0 0.0
        %1064 = vmatpush1.msra.mxu0 0.0
        %1065 = vmatprep.subr.mxu0 0.0
        %1066 = vmatpush1.msra.mxu0 0.0
        %1067 = vmatprep.subr.mxu0 0.0
        %1068 = vmatpush1.msra.mxu0 0.0
        %1069 = vmatprep.subr.mxu0 0.0
        %1070 = vmatpush1.msra.mxu0 0.0
        %1071 = vmatprep.subr.mxu0 0.0
        %1072 = vmatpush1.msra.mxu0 0.0
        %1073 = vmatprep.mubr.f32.mxu0 0.0
        %1074 = vmatmul.mubr.f32.gmra.mrb[0].mxu0 %v1001
        %v1075 = vpop.f32.mrb[0].mxu0
        %v1076 = vadd.f32 0.0, %v1075
        %v1077 = vpop.f32.mrb[0].mxu0
        %1078 = vmatprep.mubr.f32.mxu0 0.0
        %1079 = vmatmul.mubr.f32.gmra.mrb[0].mxu0 %v1003
        %v1080 = vpop.f32.mrb[0].mxu0
        %v1081 = vadd.f32 0.0, %v1080
        %v1082 = vpop.f32.mrb[0].mxu0
        %1083 = vdwg.mxu0
        %v1084 = vrot.slane %v1076, 7
        %v1085 = vrot.slane %v1081, 7
        %v1086 = vsel %vm478, %v1084, %v1085
        %v1087 = vsel %vm478, %v1085, %v1084
        %v1088 = vrot.slane %v1076, 1
        %v1089 = vrot.slane %v1081, 1
        %v1090 = vsel %vm495, %v1088, %v1089
        %v1091 = vsel %vm495, %v1089, %v1088
        %v1094 = vcombine.high %v1090, %v1090
        %v1095 = vcombine.high %v1091, %v1091
        %v1100 = vcombine.high %v1087, %v1087
        %v1101 = vcombine.high %v1086, %v1086
        %v1104 = vsel %vm504, %v1090, %v1087
        %v1105 = vsel %vm504, %v1094, %v1100
        %v1106 = vsel %vm504, %v1091, %v1086
        %v1107 = vsel %vm504, %v1095, %v1101
        %vm1108 = vcmp.eq.s32.totalorder %v468, 3
        %v1109 = vsel %vm1108, %v1087, %v1090
        %v1110 = vsel %vm1108, %v1100, %v1094
        %v1111 = vsel %vm1108, %v1086, %v1091
        %v1112 = vsel %vm1108, %v1101, %v1095
        %v1113 = vadd.f32 %v1104, %v1109
        %v1114 = vadd.f32 %v1105, %v1110
        %v1115 = vadd.f32 %v1106, %v1111
        %v1116 = vadd.f32 %v1107, %v1112
        %v1117 = vmul.f32 %v1113, 0.0751
        %v1118 = vmul.f32 %v1114, 0.0751
        %v1119 = vmul.f32 %v1115, 0.0751
        %v1120 = vmul.f32 %v1116, 0.0751
        %v1121 = vmul.f32 %v1076, 0.1238
        %v1122 = vmul.f32 %v1081, 0.1238
        %v1125 = vcombine.high %v1121, %v1121
        %v1126 = vcombine.high %v1122, %v1122
        %v1129 = vadd.f32 %v1117, %v1121
        %v1130 = vadd.f32 %v1118, %v1125
        %v1131 = vadd.f32 %v1119, %v1122
        %v1132 = vadd.f32 %v1120, %v1126
        %1135 = vrot.lane.b32.xlu0 %v1076, 126
        %v1136 = vpop.permute.xlu0 %1135
        %1137 = vrot.lane.b32.xlu0 %v1081, 126
        %v1138 = vpop.permute.xlu0 %1137
        %v1141 = vrot.slane %v1136, 7
        %v1142 = vrot.slane %v1138, 7
        %v1143 = vsel %vm478, %v1141, %v1142
        %v1144 = vsel %vm478, %v1142, %v1141
        %v1145 = vrot.slane %v1136, 1
        %v1146 = vrot.slane %v1138, 1
        %v1147 = vsel %vm495, %v1145, %v1146
        %v1148 = vsel %vm495, %v1146, %v1145
        %v1151 = vcombine.high %v1147, %v1147
        %v1152 = vcombine.high %v1148, %v1148
        %v1157 = vcombine.high %v1144, %v1144
        %v1158 = vcombine.high %v1143, %v1143
        %v1161 = vsel %vm504, %v1147, %v1144
        %v1162 = vsel %vm504, %v1151, %v1157
        %v1163 = vsel %vm504, %v1148, %v1143
        %v1164 = vsel %vm504, %v1152, %v1158
        %v1165 = vsel %vm1108, %v1144, %v1147
        %v1166 = vsel %vm1108, %v1157, %v1151
        %v1167 = vsel %vm1108, %v1143, %v1148
        %v1168 = vsel %vm1108, %v1158, %v1152
        %v1169 = vadd.f32 %v1161, %v1165
        %v1170 = vadd.f32 %v1162, %v1166
        %v1171 = vadd.f32 %v1163, %v1167
        %v1172 = vadd.f32 %v1164, %v1168
        %v1173 = vmul.f32 %v1169, 0.1238
        %v1174 = vmul.f32 %v1170, 0.1238
        %v1175 = vmul.f32 %v1171, 0.1238
        %v1176 = vmul.f32 %v1172, 0.1238
        %v1177 = vadd.f32 %v1129, %v1173
        %v1178 = vadd.f32 %v1130, %v1174
        %v1179 = vadd.f32 %v1131, %v1175
        %v1180 = vadd.f32 %v1132, %v1176
        %v1181 = vmul.f32 %v1076, 0.2042
        %v1182 = vmul.f32 %v1081, 0.2042
        %v1185 = vcombine.high %v1181, %v1181
        %v1186 = vcombine.high %v1182, %v1182
        %1187 = vrot.lane.b32.xlu0 %v1181, 126
        %v1188 = vpop.permute.xlu0 %1187
        %1189 = vrot.lane.b32.xlu0 %v1185, 126
        %v1190 = vpop.permute.xlu0 %1189
        %1191 = vrot.lane.b32.xlu0 %v1182, 126
        %v1192 = vpop.permute.xlu0 %1191
        %1193 = vrot.lane.b32.xlu0 %v1186, 126
        %v1194 = vpop.permute.xlu0 %1193
        %v1199 = vadd.f32 %v1177, %v1188
        %v1200 = vadd.f32 %v1178, %v1190
        %v1201 = vadd.f32 %v1179, %v1192
        %v1202 = vadd.f32 %v1180, %v1194
        %v1207 = vcombine.low %v1199, %v1200
        %v1208 = vcombine.low %v1201, %v1202
        %vm1211 = vcmask 15360
        %1212 = vst.msk [vmem:[#allocation4] sm:$0xff] %vm1211, %v1207
        %1213 = vst.msk [vmem:[#allocation4 + $0x8] sm:$0xff] %vm1211, %v1208
        %v1214 = vld [vmem:[#allocation4] ss:$2 sm:$0xff]
        %s1215 = scalar_lea.vmem [#allocation4], 1
        %v1216 = vld [vmem:[%s1215] ss:$2 sm:$0xff]
        %v1217 = vadd.f32 %v1214, %v1216
        %v1218 = vmul.f32 %v1217, 0.5
        %v1220 = vcombine.high %v1218, %v1218
        %v1222 = vunpack.c.l.s4 1983009808
        %v1223 = vunpack.c.0.s8 %v1222
        %v1224 = vlaneseq
        %v1225 = vshrl.u32 %v1224, 7
        %v1226 = vsub.s32 %v1223, %v1225
        %v1227 = vrot.slane %v1218, %v1226
        %v1229 = vunpack.c.l.s4 1983009808
        %v1230 = vunpack.c.0.s8 %v1229
        %v1231 = vlaneseq
        %v1232 = vshrl.u32 %v1231, 7
        %v1233 = vsub.s32 %v1230, %v1232
        %v1234 = vrot.slane %v1220, %v1233
        %v1235 = vcombine.high %v1227, %v1227
        %v1236 = vcombine.high %v1234, %v1234
        %vm1241 = vcmask 9216
        %1242 = vst.msk [vmem:[%s325] sm:$0x3] %vm1241, %v1227
        %1243 = vst.msk [vmem:[%s325 + $0x2] sm:$0x3] %vm1241, %v1235
        %1244 = vst.msk [vmem:[%s325 + $0x4] sm:$0x3] %vm1241, %v1234
        %1245 = vst.msk [vmem:[%s325 + $0x6] sm:$0x3] %vm1241, %v1236
        %s1246 = sand.u32 %s122, 1
        %s1247 = scalar_lea.sflag [#allocation7], %s1246
        %s1248 = sand.u32 %s122, 1
        %s1249 = smul.addr %s1248, 32
        %s1250 = scalar_lea.vmem [#allocation11], %s1249
        %s1251 = smul.u32 4, %s25
        %p1252 = scmp.lt.s32.totalorder %s1251, 7
        %s1253 = scalar_select %p1252, %s1251, 7
        %s1254 = smul.addr %s1253, 4
        %s1255 = scalar_lea.vmem %s5, %s1254
        %s1256 = smul.u32 4, %s25
        %p1257 = scmp.lt.s32.totalorder %s1256, 7
        %s1258 = scalar_select %p1257, %s1256, 7
        %s1259 = smul.addr %s1258, 2
        %s1260 = scalar_lea.vmem %s6, %s1259
        // Predicated region
        $region49: #{tpu_custom_call.1} parent=35 // pred_check
          %p1261 = pneg %p132
        $region50: #{tpu_custom_call.1} parent=35 // pred_check_branch
          %1263 = sbr.rel (%p1261) target = $region52
        $region51: #{tpu_custom_call.1} parent=35 // pred_region
          %s1264 = smul.u32 4, %s25
          %s1266 = ssub.s32 512, 512
          %1267 = vsyncadd %s1247, %s1266
          %s1268 = smul.addr %s1264, 128
          %s1269 = scalar_lea.hbm %s4, %s1268
          %s1270 = sshll.u32 %s1250, 4
          %s1271 = int_to_ptr.vmem [resolvable:$true] %s1270
          %1276 = dma.vmem_to_hbm [thread:$0]  %s1271, 512, %s1269, %s1247, 128, 128, 8
        $region52: #{tpu_custom_call.1} parent=35 // pred_fallthru
          _
        // Predicated region
        $region53: #{tpu_custom_call.1} parent=35 // pred_check
          %p1277 = pneg %p158
        $region54: #{tpu_custom_call.1} parent=35 // pred_check_branch
          %1279 = sbr.rel (%p1277) target = $region56
        $region55: #{tpu_custom_call.1} parent=35 // pred_region
          %s1280 = smul.u32 4, %s25
        $region56: #{tpu_custom_call.1} parent=35 // pred_fallthru
          _
        // Predicated region
        $region57: #{tpu_custom_call.1} parent=35 // pred_check
          %p1281 = pneg %p184
        $region58: #{tpu_custom_call.1} parent=35 // pred_check_branch
          %1283 = sbr.rel (%p1281) target = $region60
        $region59: #{tpu_custom_call.1} parent=35 // pred_region
          %s1284 = smul.u32 4, %s25
        $region60: #{tpu_custom_call.1} parent=35 // pred_fallthru
          _
      $region36: #{tpu_custom_call.1} parent=5 // pred_fallthru
        _
      %p1285 = scmp.le.s32.totalorder 2, %s20
      // Predicated region
      $region61: #{tpu_custom_call.1} parent=5 // pred_check
        %p1286 = pneg %p1285
      $region62: #{tpu_custom_call.1} parent=5 // pred_check_branch
        %1288 = sbr.rel (%p1286) target = $region64
      $region63: #{tpu_custom_call.1} parent=5 // pred_region
        %s1289 = ssub.s32 %s20, 2
        // Predicated region
        $region65: #{tpu_custom_call.1} parent=63 // pred_check
          %p1290 = pneg %p138
        $region66: #{tpu_custom_call.1} parent=63 // pred_check_branch
          %1292 = sbr.rel (%p1290) target = $region68
        $region67: #{tpu_custom_call.1} parent=63 // pred_region
          %s1293 = sand.u32 %s123, 1
          %s1294 = scalar_lea.sflag [#allocation7], %s1293
          %s1295 = sand.u32 %s123, 1
          %s1296 = smul.addr %s1295, 32
          %s1297 = scalar_lea.vmem [#allocation11], %s1296
          %1298 = dma.done %s1294, 512
        $region68: #{tpu_custom_call.1} parent=63 // pred_fallthru
          _
        // Predicated region
        $region69: #{tpu_custom_call.1} parent=63 // pred_check
          %p1299 = pneg %p164
        $region70: #{tpu_custom_call.1} parent=63 // pred_check_branch
          %1301 = sbr.rel (%p1299) target = $region72
        $region71: #{tpu_custom_call.1} parent=63 // pred_region
          %s1302 = smul.u32 4, %s26
          %p1303 = scmp.lt.s32.totalorder %s1302, 7
          %s1304 = scalar_select %p1303, %s1302, 7
          %s1305 = smul.addr %s1304, 4
          %s1306 = scalar_lea.vmem %s5, %s1305
        $region72: #{tpu_custom_call.1} parent=63 // pred_fallthru
          _
        // Predicated region
        $region73: #{tpu_custom_call.1} parent=63 // pred_check
          %p1307 = pneg %p190
        $region74: #{tpu_custom_call.1} parent=63 // pred_check_branch
          %1309 = sbr.rel (%p1307) target = $region76
        $region75: #{tpu_custom_call.1} parent=63 // pred_region
          %s1310 = smul.u32 4, %s26
          %p1311 = scmp.lt.s32.totalorder %s1310, 7
          %s1312 = scalar_select %p1311, %s1310, 7
          %s1313 = smul.addr %s1312, 2
          %s1314 = scalar_lea.vmem %s6, %s1313
        $region76: #{tpu_custom_call.1} parent=63 // pred_fallthru
          _
      $region64: #{tpu_custom_call.1} parent=5 // pred_fallthru
        _
    $region6: #{tpu_custom_call.1} parent=1 // loop_footer
      %s24 = sadd.s32 1, %s20
    $region7: #{tpu_custom_call.1} parent=1 // loop_footer_branch
      %19 = sbr.rel target = $region3
    $region8: #{tpu_custom_call.1} parent=1 // loop_exit
      _
    %1315 = vsyncpa [#allocation6], 1
    %s1316 = scalar_lea.sflag [#allocation6], 1
    %1317 = vsyncpa %s1316, 1
    %1318 = vsyncpa [#allocation9], 1
    %1319 = vsyncpa [#allocation7], 1
    %s1320 = scalar_lea.sflag [#allocation7], 1
    %1321 = vsyncpa %s1320, 1

</llo_original>
